<compile_context>
chip_gen: v7x
topology: tpu7x:2x2x1
jax: 0.10.0
libtpu: 0.0.40
codegen_flags: <defaults>
</compile_context>

<pallas_src>
import functools

import jax
import jax.numpy as jnp
from jax import lax
from jax.experimental import pallas as pl
from jax.experimental.pallas import tpu as pltpu


def _round_up(x, m):
    return ((x + m - 1) // m) * m


# ----------------------------- kernel -----------------------------

def gpsa_fused_kernel(gates_ref, x_ref, wqkv_ref, pos_ref, wproj_ref, bproj_ref,
                      o_ref, *, num_heads, head_pad):
    # gates_ref : (2, H)        SMEM; row 0 = 1 - sigmoid(gate), row 1 = sigmoid(gate)
    # x_ref     : (1, N, C)     current batch element (VMEM, f32)
    # wqkv_ref  : (C, 3*H*P)    fused [Wq|Wk|Wv], per-head columns padded to P, bf16,
    #                           softmax scale folded into the Wq block
    # pos_ref   : (H, N, N)     sigmoid(g_h) * softmax(pos_logits_h), f32 (precomputed)
    # wproj_ref : (H, P, C)     output projection rows per head (padded), bf16
    # bproj_ref : (1, C)        output projection bias, f32
    # o_ref     : (1, N, C)     final output for this batch element
    H, P = num_heads, head_pad
    HP = H * P
    N = x_ref.shape[1]
    C = x_ref.shape[2]

    # bf16 MXU operands, f32 accumulation (weights already bf16 from the wrapper).
    x = x_ref[0].astype(jnp.bfloat16)                                        # (N, C)
    qkv = jnp.dot(x, wqkv_ref[...], preferred_element_type=jnp.float32)      # (N, 3*H*P)

    acc = jnp.zeros((N, C), dtype=jnp.float32)

    # Heads stay unrolled (Python loop) so the LLO scheduler can overlap head h's
    # EUP exp / XLU reductions with head h+1's MXU pushes.
    for h in range(H):
        lo = h * P
        q = qkv[:, lo:lo + P].astype(jnp.bfloat16)                # lane-aligned slices
        k = qkv[:, HP + lo:HP + lo + P].astype(jnp.bfloat16)
        v = qkv[:, 2 * HP + lo:2 * HP + lo + P].astype(jnp.bfloat16)

        # q @ k^T as a last-dim contraction; scale already folded into Wq.
        s = lax.dot_general(q, k, (((1,), (1,)), ((), ())),
                            preferred_element_type=jnp.float32)              # (N, N)

        # Numerically-stable softmax; element-wise math kept in f32.
        s = s - jnp.max(s, axis=-1, keepdims=True)
        p = jnp.exp(s)
        sum_p = jnp.sum(p, axis=-1, keepdims=True)                           # (N, 1)
        inv_sum = pl.reciprocal(sum_p, approx=True)                          # EUP slot

        one_minus_g = gates_ref[0, h]                                        # SMEM scalars
        g = gates_ref[1, h]

        numer = p * (inv_sum * one_minus_g) + pos_ref[h]                     # (N, N)
        # Renormalization denominator without a second full (N,N) reduce:
        #   sum(attn, -1) = (1-g) * (sum_p * inv_sum) + g      (pos rows sum to 1)
        denom = one_minus_g * (sum_p * inv_sum) + g                          # (N, 1) ~= 1
        attn = numer * (1.0 / denom)            # exact recip -> no compounded approx error

        ctx = jnp.dot(attn.astype(jnp.bfloat16), v,
                      preferred_element_type=jnp.float32)                    # (N, P)

        # Per-head output-projection accumulation: keeps the write lane-dense (C wide)
        # and avoids concatenating H lane-misaligned (N, Ch) partial contexts.
        acc = acc + jnp.dot(ctx.astype(jnp.bfloat16), wproj_ref[h],
                            preferred_element_type=jnp.float32)              # (N, C)

    o_ref[0] = (acc + bproj_ref[...]).astype(o_ref.dtype)


# ----------------------------- glue -----------------------------

def get_rel_indices(num_patches):
    """Matches GPSA.get_rel_indices: (N, N, 3) with (dx, dy, dist^2)."""
    img_size = int(num_patches ** 0.5)
    ind = jnp.arange(img_size)[None, :] - jnp.arange(img_size)[:, None]      # (s, s)
    indx = jnp.tile(ind, (img_size, img_size))                               # (N, N)
    indy = jnp.repeat(jnp.repeat(ind, img_size, axis=0), img_size, axis=1)   # (N, N)
    indd = indx ** 2 + indy ** 2
    return jnp.stack([indx, indy, indd], axis=-1).astype(jnp.float32)        # (N, N, 3)


def gpsa_forward(x, params, num_heads):
    B, N, C = x.shape
    H = num_heads
    Ch = C // H
    scale = Ch ** -0.5

    # Pad each head's q/k/v/ctx lanes to a 128-multiple so per-head slices of the
    # fused qkv intermediate are vreg-lane aligned.
    # TODO(synk): at Ch=48/64 this trades padded QKV FLOPs against XLU relayouts;
    # measure on real ViT shapes and drop the padding if the kernel becomes MXU-bound.
    P = Ch if Ch % 128 == 0 else _round_up(Ch, 128)

    def pad_head_cols(w):                                   # (C, H*Ch) -> (C, H*P)
        w = w.reshape(C, H, Ch)
        if P > Ch:
            w = jnp.pad(w, ((0, 0), (0, 0), (0, P - Ch)))
        return w.reshape(C, H * P)

    qk_t = params["qk_w"].T.astype(jnp.float32)             # (C, 2C), (in, out) layout
    wq = qk_t[:, :C] * jnp.float32(scale)                   # fold softmax scale into Wq
    wk = qk_t[:, C:]
    wv = params["v_w"].T.astype(jnp.float32)                # (C, C)
    wqkv = jnp.concatenate(
        [pad_head_cols(wq), pad_head_cols(wk), pad_head_cols(wv)],
        axis=1).astype(jnp.bfloat16)                         # (C, 3*H*P) bf16

    wproj = params["proj_w"].T.astype(jnp.float32).reshape(H, Ch, C)
    if P > Ch:
        wproj = jnp.pad(wproj, ((0, 0), (0, P - Ch), (0, 0)))
    wproj = wproj.astype(jnp.bfloat16)                       # (H, P, C) bf16
    bproj = params["proj_b"].reshape(1, C).astype(jnp.float32)

    # Head-only positional attention: softmax + gate scaling done ONCE here
    # (batch-independent, so never recomputed inside the kernel).
    rel = get_rel_indices(N)                                                  # (N, N, 3)
    pos_logits = (rel @ params["pos_w"].T + params["pos_b"]).transpose(2, 0, 1)  # (H,N,N)
    g = jax.nn.sigmoid(params["gating"]).astype(jnp.float32)                  # (H,)
    pos_scaled = (g[:, None, None]
                  * jax.nn.softmax(pos_logits, axis=-1)).astype(jnp.float32)  # (H, N, N)
    gates = jnp.stack([1.0 - g, g], axis=0).astype(jnp.float32)               # (2, H) SMEM

    # Rough VMEM budget: double-buffered inputs + compiler-managed scratch
    # (qkv intermediate, per-head (N,N) temps, f32 accumulator), clamped to a range
    # that is safe on v5e/v6e (128 MiB) and v7x (64 MiB).
    weight_bytes = wqkv.size * 2 + wproj.size * 2 + pos_scaled.size * 4 + bproj.size * 4
    block_bytes = 2 * N * C * x.dtype.itemsize
    scratch_bytes = N * 3 * H * P * 4 + 3 * N * N * 4 + N * C * 4 + 2 * N * P * 4
    vmem_limit = int(min(64 * 2 ** 20,
                         max(32 * 2 ** 20,
                             2 * (weight_bytes + block_bytes) + scratch_bytes)))

    out = pl.pallas_call(
        functools.partial(gpsa_fused_kernel, num_heads=H, head_pad=P),
        out_shape=jax.ShapeDtypeStruct((B, N, C), x.dtype),
        grid_spec=pltpu.PrefetchScalarGridSpec(
            num_scalar_prefetch=0,
            grid=(B,),
            in_specs=[
                pl.BlockSpec(memory_space=pltpu.MemorySpace.SMEM),     # gates (2, H)
                pl.BlockSpec((1, N, C), lambda b: (b, 0, 0)),          # x[b]
                pl.BlockSpec((C, 3 * H * P), lambda b: (0, 0)),        # fused Wqkv (bf16)
                pl.BlockSpec((H, N, N), lambda b: (0, 0, 0)),          # gated pos softmax
                pl.BlockSpec((H, P, C), lambda b: (0, 0, 0)),          # Wproj per head (bf16)
                pl.BlockSpec((1, C), lambda b: (0, 0)),                # proj bias
            ],
            out_specs=pl.BlockSpec((1, N, C), lambda b: (b, 0, 0)),
        ),
        compiler_params=pltpu.CompilerParams(
            dimension_semantics=("parallel",),
            vmem_limit_bytes=vmem_limit),
    )(gates, x, wqkv, pos_scaled, wproj, bproj)
    return out


# ----------------------------- pure-JAX reference -----------------------------

def gpsa_reference(x, params, num_heads):
    B, N, C = x.shape
    Ch = C // num_heads
    scale = Ch ** -0.5
    qk = (x @ params["qk_w"].T).reshape(B, N, 2, num_heads, Ch).transpose(2, 0, 3, 1, 4)
    q, k = qk[0], qk[1]
    rel = get_rel_indices(N)
    pos = (rel @ params["pos_w"].T + params["pos_b"])[None]                   # (1, N, N, H)
    pos = jnp.broadcast_to(pos, (B, N, N, num_heads)).transpose(0, 3, 1, 2)
    patch = jax.nn.softmax(jnp.einsum("bhnd,bhmd->bhnm", q, k) * scale, axis=-1)
    pos = jax.nn.softmax(pos, axis=-1)
    g = jax.nn.sigmoid(params["gating"]).reshape(1, num_heads, 1, 1)
    attn = (1.0 - g) * patch + g * pos
    attn = attn / attn.sum(-1, keepdims=True)
    v = (x @ params["v_w"].T).reshape(B, N, num_heads, Ch).transpose(0, 2, 1, 3)
    out = jnp.einsum("bhnm,bhmd->bhnd", attn, v).transpose(0, 2, 1, 3).reshape(B, N, C)
    return out @ params["proj_w"].T + params["proj_b"]


# ----------------------------- main -----------------------------

if __name__ == "__main__":
    B, N, C, H = 2, 16, 32, 4       # N = 16 -> 4x4 patch grid

    key = jax.random.PRNGKey(0)
    k_x, k_qk, k_v, k_pw, k_pb, k_prw, k_prb = jax.random.split(key, 7)

    x = jax.random.normal(k_x, (B, N, C), dtype=jnp.float32)
    params = {
        "qk_w": 0.02 * jax.random.normal(k_qk, (2 * C, C), dtype=jnp.float32),
        "v_w": 0.02 * jax.random.normal(k_v, (C, C), dtype=jnp.float32),
        "pos_w": 0.1 * jax.random.normal(k_pw, (H, 3), dtype=jnp.float32),
        "pos_b": 0.1 * jax.random.normal(k_pb, (H,), dtype=jnp.float32),
        "proj_w": 0.02 * jax.random.normal(k_prw, (C, C), dtype=jnp.float32),
        "proj_b": 0.1 * jax.random.normal(k_prb, (C,), dtype=jnp.float32),
        "gating": jnp.ones((H,), dtype=jnp.float32),   # matches nn.Parameter(torch.ones(H))
    }

    out = jax.block_until_ready(gpsa_forward(x, params, H))
    ref = jax.block_until_ready(gpsa_reference(x, params, H))

    # Tolerance sized for bf16 MXU operands (f32 accumulation) + one approx
    # EUP reciprocal whose error largely cancels through the renorm denominator.
    if not jnp.allclose(out, ref, atol=2e-3, rtol=2e-3):
        err = float(jnp.max(jnp.abs(out - ref)))
        raise AssertionError(f"Pallas GPSA output mismatch vs reference (max err {err})")
    print("KERNEL_OK")
</pallas_src>

<mosaic_0001>
module attributes {stable_mosaic.version = 11 : i64} {
  func.func @gpsa_fused_kernel(%arg0: i32, %arg1: memref<2x4xf32, #tpu.memory_space<smem>>, %arg2: memref<1x16x32xf32, #tpu.memory_space<vmem>>, %arg3: memref<32x1536xbf16, #tpu.memory_space<vmem>>, %arg4: memref<4x16x16xf32, #tpu.memory_space<vmem>>, %arg5: memref<4x128x32xbf16, #tpu.memory_space<vmem>>, %arg6: memref<1x32xf32, #tpu.memory_space<vmem>>, %arg7: memref<1x16x32xf32, #tpu.memory_space<vmem>>) attributes {dimension_semantics = [#tpu.dimension_semantics<parallel>], iteration_bounds = array<i64: 2>, scalar_prefetch = 0 : i64, scratch_operands = 0 : i64, tpu.core_type = #tpu.core_type<tc>, window_params = [{transform_indices = @transform_0, window_bounds = array<i64: 2, 4>}, {transform_indices = @transform_1, window_bounds = array<i64: 1, 16, 32>}, {pipeline_mode = #tpu.pipeline_mode<synchronous>, transform_indices = @transform_2, window_bounds = array<i64: 32, 1536>}, {pipeline_mode = #tpu.pipeline_mode<synchronous>, transform_indices = @transform_3, window_bounds = array<i64: 4, 16, 16>}, {pipeline_mode = #tpu.pipeline_mode<synchronous>, transform_indices = @transform_4, window_bounds = array<i64: 4, 128, 32>}, {pipeline_mode = #tpu.pipeline_mode<synchronous>, transform_indices = @transform_5, window_bounds = array<i64: 1, 32>}, {transform_indices = @transform_6, window_bounds = array<i64: 1, 16, 32>}]} {
    %c0 = arith.constant 0 : index
    %c0_0 = arith.constant 0 : index
    %c0_1 = arith.constant 0 : index
    %0 = vector.load %arg2[%c0, %c0_0, %c0_1] : memref<1x16x32xf32, #tpu.memory_space<vmem>>, vector<1x16x32xf32>
    %1 = vector.shape_cast %0 : vector<1x16x32xf32> to vector<16x32xf32>
    %2 = arith.truncf %1 : vector<16x32xf32> to vector<16x32xbf16>
    %c0_2 = arith.constant 0 : index
    %c0_3 = arith.constant 0 : index
    %3 = vector.load %arg3[%c0_2, %c0_3] : memref<32x1536xbf16, #tpu.memory_space<vmem>>, vector<32x1536xbf16>
    %cst = arith.constant dense<0.000000e+00> : vector<16x1536xf32>
    %4 = tpu.matmul %2, %3, %cst {dimension_numbers = #tpu.dot_dimension_numbers<[1], [0], [0], [1], [0, 0, 1, 1], [], []>} : vector<16x32xbf16>, vector<32x1536xbf16>, vector<16x1536xf32> -> vector<16x1536xf32>
    %cst_4 = arith.constant 0.000000e+00 : f32
    %5 = vector.broadcast %cst_4 : f32 to vector<16x32xf32>
    %6 = vector.extract_strided_slice %4 {offsets = [0, 0], sizes = [16, 128], strides = [1, 1]} : vector<16x1536xf32> to vector<16x128xf32>
    %7 = arith.truncf %6 : vector<16x128xf32> to vector<16x128xbf16>
    %8 = vector.extract_strided_slice %4 {offsets = [0, 512], sizes = [16, 128], strides = [1, 1]} : vector<16x1536xf32> to vector<16x128xf32>
    %9 = arith.truncf %8 : vector<16x128xf32> to vector<16x128xbf16>
    %10 = vector.extract_strided_slice %4 {offsets = [0, 1024], sizes = [16, 128], strides = [1, 1]} : vector<16x1536xf32> to vector<16x128xf32>
    %11 = arith.truncf %10 : vector<16x128xf32> to vector<16x128xbf16>
    %cst_5 = arith.constant dense<0.000000e+00> : vector<16x16xf32>
    %12 = tpu.matmul %7, %9, %cst_5 {dimension_numbers = #tpu.dot_dimension_numbers<[1], [1], [0], [0], [0, 0, 1, 0], [], []>} : vector<16x128xbf16>, vector<16x128xbf16>, vector<16x16xf32> -> vector<16x16xf32>
    %cst_6 = arith.constant dense<0xFF800000> : vector<16xf32>
    %13 = vector.multi_reduction <maximumf>, %12, %cst_6 [1] : vector<16x16xf32> to vector<16xf32>
    %14 = vector.shape_cast %13 : vector<16xf32> to vector<16x1xf32>
    %15 = vector.broadcast %14 : vector<16x1xf32> to vector<16x16xf32>
    %16 = arith.subf %12, %15 : vector<16x16xf32>
    %17 = math.exp %16 : vector<16x16xf32>
    %cst_7 = arith.constant dense<0.000000e+00> : vector<16xf32>
    %18 = vector.multi_reduction <add>, %17, %cst_7 [1] : vector<16x16xf32> to vector<16xf32>
    %19 = vector.shape_cast %18 : vector<16xf32> to vector<16x1xf32>
    %20 = tpu.reciprocal %19 {approx = true} : vector<16x1xf32> -> vector<16x1xf32>
    %c0_8 = arith.constant 0 : index
    %c0_9 = arith.constant 0 : index
    %21 = memref.load %arg1[%c0_8, %c0_9] : memref<2x4xf32, #tpu.memory_space<smem>>
    %c1 = arith.constant 1 : index
    %c0_10 = arith.constant 0 : index
    %22 = memref.load %arg1[%c1, %c0_10] : memref<2x4xf32, #tpu.memory_space<smem>>
    %23 = vector.broadcast %21 : f32 to vector<16x1xf32>
    %24 = arith.mulf %20, %23 : vector<16x1xf32>
    %25 = vector.broadcast %24 : vector<16x1xf32> to vector<16x16xf32>
    %26 = arith.mulf %17, %25 : vector<16x16xf32>
    %c0_11 = arith.constant 0 : index
    %c0_12 = arith.constant 0 : index
    %c0_13 = arith.constant 0 : index
    %27 = vector.load %arg4[%c0_11, %c0_12, %c0_13] : memref<4x16x16xf32, #tpu.memory_space<vmem>>, vector<1x16x16xf32>
    %28 = vector.shape_cast %27 : vector<1x16x16xf32> to vector<16x16xf32>
    %29 = arith.addf %26, %28 : vector<16x16xf32>
    %30 = arith.mulf %19, %20 : vector<16x1xf32>
    %31 = vector.broadcast %21 : f32 to vector<16x1xf32>
    %32 = arith.mulf %31, %30 : vector<16x1xf32>
    %33 = vector.broadcast %22 : f32 to vector<16x1xf32>
    %34 = arith.addf %32, %33 : vector<16x1xf32>
    %cst_14 = arith.constant 1.000000e+00 : f32
    %35 = vector.broadcast %cst_14 : f32 to vector<16x1xf32>
    %36 = arith.divf %35, %34 : vector<16x1xf32>
    %37 = vector.broadcast %36 : vector<16x1xf32> to vector<16x16xf32>
    %38 = arith.mulf %29, %37 : vector<16x16xf32>
    %39 = arith.truncf %38 : vector<16x16xf32> to vector<16x16xbf16>
    %cst_15 = arith.constant dense<0.000000e+00> : vector<16x128xf32>
    %40 = tpu.matmul %39, %11, %cst_15 {dimension_numbers = #tpu.dot_dimension_numbers<[1], [0], [0], [1], [0, 0, 1, 1], [], []>} : vector<16x16xbf16>, vector<16x128xbf16>, vector<16x128xf32> -> vector<16x128xf32>
    %41 = arith.truncf %40 : vector<16x128xf32> to vector<16x128xbf16>
    %c0_16 = arith.constant 0 : index
    %c0_17 = arith.constant 0 : index
    %c0_18 = arith.constant 0 : index
    %42 = vector.load %arg5[%c0_16, %c0_17, %c0_18] : memref<4x128x32xbf16, #tpu.memory_space<vmem>>, vector<1x128x32xbf16>
    %43 = vector.shape_cast %42 : vector<1x128x32xbf16> to vector<128x32xbf16>
    %cst_19 = arith.constant dense<0.000000e+00> : vector<16x32xf32>
    %44 = tpu.matmul %41, %43, %cst_19 {dimension_numbers = #tpu.dot_dimension_numbers<[1], [0], [0], [1], [0, 0, 1, 1], [], []>} : vector<16x128xbf16>, vector<128x32xbf16>, vector<16x32xf32> -> vector<16x32xf32>
    %45 = arith.addf %5, %44 : vector<16x32xf32>
    %46 = vector.extract_strided_slice %4 {offsets = [0, 128], sizes = [16, 128], strides = [1, 1]} : vector<16x1536xf32> to vector<16x128xf32>
    %47 = arith.truncf %46 : vector<16x128xf32> to vector<16x128xbf16>
    %48 = vector.extract_strided_slice %4 {offsets = [0, 640], sizes = [16, 128], strides = [1, 1]} : vector<16x1536xf32> to vector<16x128xf32>
    %49 = arith.truncf %48 : vector<16x128xf32> to vector<16x128xbf16>
    %50 = vector.extract_strided_slice %4 {offsets = [0, 1152], sizes = [16, 128], strides = [1, 1]} : vector<16x1536xf32> to vector<16x128xf32>
    %51 = arith.truncf %50 : vector<16x128xf32> to vector<16x128xbf16>
    %cst_20 = arith.constant dense<0.000000e+00> : vector<16x16xf32>
    %52 = tpu.matmul %47, %49, %cst_20 {dimension_numbers = #tpu.dot_dimension_numbers<[1], [1], [0], [0], [0, 0, 1, 0], [], []>} : vector<16x128xbf16>, vector<16x128xbf16>, vector<16x16xf32> -> vector<16x16xf32>
    %cst_21 = arith.constant dense<0xFF800000> : vector<16xf32>
    %53 = vector.multi_reduction <maximumf>, %52, %cst_21 [1] : vector<16x16xf32> to vector<16xf32>
    %54 = vector.shape_cast %53 : vector<16xf32> to vector<16x1xf32>
    %55 = vector.broadcast %54 : vector<16x1xf32> to vector<16x16xf32>
    %56 = arith.subf %52, %55 : vector<16x16xf32>
    %57 = math.exp %56 : vector<16x16xf32>
    %cst_22 = arith.constant dense<0.000000e+00> : vector<16xf32>
    %58 = vector.multi_reduction <add>, %57, %cst_22 [1] : vector<16x16xf32> to vector<16xf32>
    %59 = vector.shape_cast %58 : vector<16xf32> to vector<16x1xf32>
    %60 = tpu.reciprocal %59 {approx = true} : vector<16x1xf32> -> vector<16x1xf32>
    %c0_23 = arith.constant 0 : index
    %c1_24 = arith.constant 1 : index
    %61 = memref.load %arg1[%c0_23, %c1_24] : memref<2x4xf32, #tpu.memory_space<smem>>
    %c1_25 = arith.constant 1 : index
    %c1_26 = arith.constant 1 : index
    %62 = memref.load %arg1[%c1_25, %c1_26] : memref<2x4xf32, #tpu.memory_space<smem>>
    %63 = vector.broadcast %61 : f32 to vector<16x1xf32>
    %64 = arith.mulf %60, %63 : vector<16x1xf32>
    %65 = vector.broadcast %64 : vector<16x1xf32> to vector<16x16xf32>
    %66 = arith.mulf %57, %65 : vector<16x16xf32>
    %c1_27 = arith.constant 1 : index
    %c0_28 = arith.constant 0 : index
    %c0_29 = arith.constant 0 : index
    %67 = vector.load %arg4[%c1_27, %c0_28, %c0_29] : memref<4x16x16xf32, #tpu.memory_space<vmem>>, vector<1x16x16xf32>
    %68 = vector.shape_cast %67 : vector<1x16x16xf32> to vector<16x16xf32>
    %69 = arith.addf %66, %68 : vector<16x16xf32>
    %70 = arith.mulf %59, %60 : vector<16x1xf32>
    %71 = vector.broadcast %61 : f32 to vector<16x1xf32>
    %72 = arith.mulf %71, %70 : vector<16x1xf32>
    %73 = vector.broadcast %62 : f32 to vector<16x1xf32>
    %74 = arith.addf %72, %73 : vector<16x1xf32>
    %cst_30 = arith.constant 1.000000e+00 : f32
    %75 = vector.broadcast %cst_30 : f32 to vector<16x1xf32>
    %76 = arith.divf %75, %74 : vector<16x1xf32>
    %77 = vector.broadcast %76 : vector<16x1xf32> to vector<16x16xf32>
    %78 = arith.mulf %69, %77 : vector<16x16xf32>
    %79 = arith.truncf %78 : vector<16x16xf32> to vector<16x16xbf16>
    %cst_31 = arith.constant dense<0.000000e+00> : vector<16x128xf32>
    %80 = tpu.matmul %79, %51, %cst_31 {dimension_numbers = #tpu.dot_dimension_numbers<[1], [0], [0], [1], [0, 0, 1, 1], [], []>} : vector<16x16xbf16>, vector<16x128xbf16>, vector<16x128xf32> -> vector<16x128xf32>
    %81 = arith.truncf %80 : vector<16x128xf32> to vector<16x128xbf16>
    %c1_32 = arith.constant 1 : index
    %c0_33 = arith.constant 0 : index
    %c0_34 = arith.constant 0 : index
    %82 = vector.load %arg5[%c1_32, %c0_33, %c0_34] : memref<4x128x32xbf16, #tpu.memory_space<vmem>>, vector<1x128x32xbf16>
    %83 = vector.shape_cast %82 : vector<1x128x32xbf16> to vector<128x32xbf16>
    %cst_35 = arith.constant dense<0.000000e+00> : vector<16x32xf32>
    %84 = tpu.matmul %81, %83, %cst_35 {dimension_numbers = #tpu.dot_dimension_numbers<[1], [0], [0], [1], [0, 0, 1, 1], [], []>} : vector<16x128xbf16>, vector<128x32xbf16>, vector<16x32xf32> -> vector<16x32xf32>
    %85 = arith.addf %45, %84 : vector<16x32xf32>
    %86 = vector.extract_strided_slice %4 {offsets = [0, 256], sizes = [16, 128], strides = [1, 1]} : vector<16x1536xf32> to vector<16x128xf32>
    %87 = arith.truncf %86 : vector<16x128xf32> to vector<16x128xbf16>
    %88 = vector.extract_strided_slice %4 {offsets = [0, 768], sizes = [16, 128], strides = [1, 1]} : vector<16x1536xf32> to vector<16x128xf32>
    %89 = arith.truncf %88 : vector<16x128xf32> to vector<16x128xbf16>
    %90 = vector.extract_strided_slice %4 {offsets = [0, 1280], sizes = [16, 128], strides = [1, 1]} : vector<16x1536xf32> to vector<16x128xf32>
    %91 = arith.truncf %90 : vector<16x128xf32> to vector<16x128xbf16>
    %cst_36 = arith.constant dense<0.000000e+00> : vector<16x16xf32>
    %92 = tpu.matmul %87, %89, %cst_36 {dimension_numbers = #tpu.dot_dimension_numbers<[1], [1], [0], [0], [0, 0, 1, 0], [], []>} : vector<16x128xbf16>, vector<16x128xbf16>, vector<16x16xf32> -> vector<16x16xf32>
    %cst_37 = arith.constant dense<0xFF800000> : vector<16xf32>
    %93 = vector.multi_reduction <maximumf>, %92, %cst_37 [1] : vector<16x16xf32> to vector<16xf32>
    %94 = vector.shape_cast %93 : vector<16xf32> to vector<16x1xf32>
    %95 = vector.broadcast %94 : vector<16x1xf32> to vector<16x16xf32>
    %96 = arith.subf %92, %95 : vector<16x16xf32>
    %97 = math.exp %96 : vector<16x16xf32>
    %cst_38 = arith.constant dense<0.000000e+00> : vector<16xf32>
    %98 = vector.multi_reduction <add>, %97, %cst_38 [1] : vector<16x16xf32> to vector<16xf32>
    %99 = vector.shape_cast %98 : vector<16xf32> to vector<16x1xf32>
    %100 = tpu.reciprocal %99 {approx = true} : vector<16x1xf32> -> vector<16x1xf32>
    %c0_39 = arith.constant 0 : index
    %c2 = arith.constant 2 : index
    %101 = memref.load %arg1[%c0_39, %c2] : memref<2x4xf32, #tpu.memory_space<smem>>
    %c1_40 = arith.constant 1 : index
    %c2_41 = arith.constant 2 : index
    %102 = memref.load %arg1[%c1_40, %c2_41] : memref<2x4xf32, #tpu.memory_space<smem>>
    %103 = vector.broadcast %101 : f32 to vector<16x1xf32>
    %104 = arith.mulf %100, %103 : vector<16x1xf32>
    %105 = vector.broadcast %104 : vector<16x1xf32> to vector<16x16xf32>
    %106 = arith.mulf %97, %105 : vector<16x16xf32>
    %c2_42 = arith.constant 2 : index
    %c0_43 = arith.constant 0 : index
    %c0_44 = arith.constant 0 : index
    %107 = vector.load %arg4[%c2_42, %c0_43, %c0_44] : memref<4x16x16xf32, #tpu.memory_space<vmem>>, vector<1x16x16xf32>
    %108 = vector.shape_cast %107 : vector<1x16x16xf32> to vector<16x16xf32>
    %109 = arith.addf %106, %108 : vector<16x16xf32>
    %110 = arith.mulf %99, %100 : vector<16x1xf32>
    %111 = vector.broadcast %101 : f32 to vector<16x1xf32>
    %112 = arith.mulf %111, %110 : vector<16x1xf32>
    %113 = vector.broadcast %102 : f32 to vector<16x1xf32>
    %114 = arith.addf %112, %113 : vector<16x1xf32>
    %cst_45 = arith.constant 1.000000e+00 : f32
    %115 = vector.broadcast %cst_45 : f32 to vector<16x1xf32>
    %116 = arith.divf %115, %114 : vector<16x1xf32>
    %117 = vector.broadcast %116 : vector<16x1xf32> to vector<16x16xf32>
    %118 = arith.mulf %109, %117 : vector<16x16xf32>
    %119 = arith.truncf %118 : vector<16x16xf32> to vector<16x16xbf16>
    %cst_46 = arith.constant dense<0.000000e+00> : vector<16x128xf32>
    %120 = tpu.matmul %119, %91, %cst_46 {dimension_numbers = #tpu.dot_dimension_numbers<[1], [0], [0], [1], [0, 0, 1, 1], [], []>} : vector<16x16xbf16>, vector<16x128xbf16>, vector<16x128xf32> -> vector<16x128xf32>
    %121 = arith.truncf %120 : vector<16x128xf32> to vector<16x128xbf16>
    %c2_47 = arith.constant 2 : index
    %c0_48 = arith.constant 0 : index
    %c0_49 = arith.constant 0 : index
    %122 = vector.load %arg5[%c2_47, %c0_48, %c0_49] : memref<4x128x32xbf16, #tpu.memory_space<vmem>>, vector<1x128x32xbf16>
    %123 = vector.shape_cast %122 : vector<1x128x32xbf16> to vector<128x32xbf16>
    %cst_50 = arith.constant dense<0.000000e+00> : vector<16x32xf32>
    %124 = tpu.matmul %121, %123, %cst_50 {dimension_numbers = #tpu.dot_dimension_numbers<[1], [0], [0], [1], [0, 0, 1, 1], [], []>} : vector<16x128xbf16>, vector<128x32xbf16>, vector<16x32xf32> -> vector<16x32xf32>
    %125 = arith.addf %85, %124 : vector<16x32xf32>
    %126 = vector.extract_strided_slice %4 {offsets = [0, 384], sizes = [16, 128], strides = [1, 1]} : vector<16x1536xf32> to vector<16x128xf32>
    %127 = arith.truncf %126 : vector<16x128xf32> to vector<16x128xbf16>
    %128 = vector.extract_strided_slice %4 {offsets = [0, 896], sizes = [16, 128], strides = [1, 1]} : vector<16x1536xf32> to vector<16x128xf32>
    %129 = arith.truncf %128 : vector<16x128xf32> to vector<16x128xbf16>
    %130 = vector.extract_strided_slice %4 {offsets = [0, 1408], sizes = [16, 128], strides = [1, 1]} : vector<16x1536xf32> to vector<16x128xf32>
    %131 = arith.truncf %130 : vector<16x128xf32> to vector<16x128xbf16>
    %cst_51 = arith.constant dense<0.000000e+00> : vector<16x16xf32>
    %132 = tpu.matmul %127, %129, %cst_51 {dimension_numbers = #tpu.dot_dimension_numbers<[1], [1], [0], [0], [0, 0, 1, 0], [], []>} : vector<16x128xbf16>, vector<16x128xbf16>, vector<16x16xf32> -> vector<16x16xf32>
    %cst_52 = arith.constant dense<0xFF800000> : vector<16xf32>
    %133 = vector.multi_reduction <maximumf>, %132, %cst_52 [1] : vector<16x16xf32> to vector<16xf32>
    %134 = vector.shape_cast %133 : vector<16xf32> to vector<16x1xf32>
    %135 = vector.broadcast %134 : vector<16x1xf32> to vector<16x16xf32>
    %136 = arith.subf %132, %135 : vector<16x16xf32>
    %137 = math.exp %136 : vector<16x16xf32>
    %cst_53 = arith.constant dense<0.000000e+00> : vector<16xf32>
    %138 = vector.multi_reduction <add>, %137, %cst_53 [1] : vector<16x16xf32> to vector<16xf32>
    %139 = vector.shape_cast %138 : vector<16xf32> to vector<16x1xf32>
    %140 = tpu.reciprocal %139 {approx = true} : vector<16x1xf32> -> vector<16x1xf32>
    %c0_54 = arith.constant 0 : index
    %c3 = arith.constant 3 : index
    %141 = memref.load %arg1[%c0_54, %c3] : memref<2x4xf32, #tpu.memory_space<smem>>
    %c1_55 = arith.constant 1 : index
    %c3_56 = arith.constant 3 : index
    %142 = memref.load %arg1[%c1_55, %c3_56] : memref<2x4xf32, #tpu.memory_space<smem>>
    %143 = vector.broadcast %141 : f32 to vector<16x1xf32>
    %144 = arith.mulf %140, %143 : vector<16x1xf32>
    %145 = vector.broadcast %144 : vector<16x1xf32> to vector<16x16xf32>
    %146 = arith.mulf %137, %145 : vector<16x16xf32>
    %c3_57 = arith.constant 3 : index
    %c0_58 = arith.constant 0 : index
    %c0_59 = arith.constant 0 : index
    %147 = vector.load %arg4[%c3_57, %c0_58, %c0_59] : memref<4x16x16xf32, #tpu.memory_space<vmem>>, vector<1x16x16xf32>
    %148 = vector.shape_cast %147 : vector<1x16x16xf32> to vector<16x16xf32>
    %149 = arith.addf %146, %148 : vector<16x16xf32>
    %150 = arith.mulf %139, %140 : vector<16x1xf32>
    %151 = vector.broadcast %141 : f32 to vector<16x1xf32>
    %152 = arith.mulf %151, %150 : vector<16x1xf32>
    %153 = vector.broadcast %142 : f32 to vector<16x1xf32>
    %154 = arith.addf %152, %153 : vector<16x1xf32>
    %cst_60 = arith.constant 1.000000e+00 : f32
    %155 = vector.broadcast %cst_60 : f32 to vector<16x1xf32>
    %156 = arith.divf %155, %154 : vector<16x1xf32>
    %157 = vector.broadcast %156 : vector<16x1xf32> to vector<16x16xf32>
    %158 = arith.mulf %149, %157 : vector<16x16xf32>
    %159 = arith.truncf %158 : vector<16x16xf32> to vector<16x16xbf16>
    %cst_61 = arith.constant dense<0.000000e+00> : vector<16x128xf32>
    %160 = tpu.matmul %159, %131, %cst_61 {dimension_numbers = #tpu.dot_dimension_numbers<[1], [0], [0], [1], [0, 0, 1, 1], [], []>} : vector<16x16xbf16>, vector<16x128xbf16>, vector<16x128xf32> -> vector<16x128xf32>
    %161 = arith.truncf %160 : vector<16x128xf32> to vector<16x128xbf16>
    %c3_62 = arith.constant 3 : index
    %c0_63 = arith.constant 0 : index
    %c0_64 = arith.constant 0 : index
    %162 = vector.load %arg5[%c3_62, %c0_63, %c0_64] : memref<4x128x32xbf16, #tpu.memory_space<vmem>>, vector<1x128x32xbf16>
    %163 = vector.shape_cast %162 : vector<1x128x32xbf16> to vector<128x32xbf16>
    %cst_65 = arith.constant dense<0.000000e+00> : vector<16x32xf32>
    %164 = tpu.matmul %161, %163, %cst_65 {dimension_numbers = #tpu.dot_dimension_numbers<[1], [0], [0], [1], [0, 0, 1, 1], [], []>} : vector<16x128xbf16>, vector<128x32xbf16>, vector<16x32xf32> -> vector<16x32xf32>
    %165 = arith.addf %125, %164 : vector<16x32xf32>
    %c0_66 = arith.constant 0 : index
    %c0_67 = arith.constant 0 : index
    %166 = vector.load %arg6[%c0_66, %c0_67] : memref<1x32xf32, #tpu.memory_space<vmem>>, vector<1x32xf32>
    %167 = vector.broadcast %166 : vector<1x32xf32> to vector<16x32xf32>
    %168 = arith.addf %165, %167 : vector<16x32xf32>
    %c0_68 = arith.constant 0 : index
    %c0_69 = arith.constant 0 : index
    %c0_70 = arith.constant 0 : index
    %169 = vector.load %arg7[%c0_68, %c0_69, %c0_70] : memref<1x16x32xf32, #tpu.memory_space<vmem>>, vector<1x16x32xf32>
    %170 = vector.shape_cast %169 : vector<1x16x32xf32> to vector<16x32xf32>
    %171 = vector.shape_cast %168 : vector<16x32xf32> to vector<1x16x32xf32>
    tpu.vector_store %arg7[%c0_68, %c0_69, %c0_70], %171 {strides = array<i32>} : memref<1x16x32xf32, #tpu.memory_space<vmem>>, vector<1x16x32xf32>,
    return
  }
  func.func @transform_0(%arg0: i32) -> (i32, i32) {
    %c0_i32 = arith.constant 0 : i32
    %c0_i32_0 = arith.constant 0 : i32
    %c0_i32_1 = arith.constant 0 : i32
    return %c0_i32, %c0_i32_0 : i32, i32
  }
  func.func @transform_1(%arg0: i32) -> (i32, i32, i32) {
    %c0_i32 = arith.constant 0 : i32
    %c0_i32_0 = arith.constant 0 : i32
    %c0_i32_1 = arith.constant 0 : i32
    return %arg0, %c0_i32, %c0_i32_0 : i32, i32, i32
  }
  func.func @transform_2(%arg0: i32) -> (i32, i32) {
    %c0_i32 = arith.constant 0 : i32
    %c0_i32_0 = arith.constant 0 : i32
    %c0_i32_1 = arith.constant 0 : i32
    return %c0_i32, %c0_i32_0 : i32, i32
  }
  func.func @transform_3(%arg0: i32) -> (i32, i32, i32) {
    %c0_i32 = arith.constant 0 : i32
    %c0_i32_0 = arith.constant 0 : i32
    %c0_i32_1 = arith.constant 0 : i32
    %c0_i32_2 = arith.constant 0 : i32
    return %c0_i32, %c0_i32_0, %c0_i32_1 : i32, i32, i32
  }
  func.func @transform_4(%arg0: i32) -> (i32, i32, i32) {
    %c0_i32 = arith.constant 0 : i32
    %c0_i32_0 = arith.constant 0 : i32
    %c0_i32_1 = arith.constant 0 : i32
    %c0_i32_2 = arith.constant 0 : i32
    return %c0_i32, %c0_i32_0, %c0_i32_1 : i32, i32, i32
  }
  func.func @transform_5(%arg0: i32) -> (i32, i32) {
    %c0_i32 = arith.constant 0 : i32
    %c0_i32_0 = arith.constant 0 : i32
    %c0_i32_1 = arith.constant 0 : i32
    return %c0_i32, %c0_i32_0 : i32, i32
  }
  func.func @transform_6(%arg0: i32) -> (i32, i32, i32) {
    %c0_i32 = arith.constant 0 : i32
    %c0_i32_0 = arith.constant 0 : i32
    %c0_i32_1 = arith.constant 0 : i32
    return %arg0, %c0_i32, %c0_i32_0 : i32, i32, i32
  }
}

</mosaic_0001>

<llo_original>
// kernel: tpu_custom_call.1
$region0: #{tpu_custom_call.1}
  #allocation0 [shape = 'u32[]', space=smem, size = 0x4, offset = 0x4, fixed_abs, tag = 'smem constant byte address 0x4 - core index']
  #allocation1 [shape = 'u32[144,128]{1,0:T(1,128)}', space=vmem, size = 0x12000, scoped, tag = 'internal scratch']
  %s0 = inlined_call_operand.vmem [shape: f32[2,4], index: 0, kind: input, shape index: {}]
  %s1 = inlined_call_operand.vmem [shape: f32[2,16,32], index: 1, kind: input, shape index: {}]
  %s2 = inlined_call_operand.vmem [shape: bf16[32,1536], index: 2, kind: input, shape index: {}]
  %s3 = inlined_call_operand.vmem [shape: f32[4,16,16], index: 3, kind: input, shape index: {}]
  %s4 = inlined_call_operand.vmem [shape: bf16[4,128,32], index: 4, kind: input, shape index: {}]
  %s5 = inlined_call_operand.vmem [shape: f32[1,32], index: 5, kind: input, shape index: {}]
  %s6 = inlined_call_operand.hbm [shape: f32[2,16,32], index: 6, kind: output, shape index: {}]
  %s7 = sld [smem:[#allocation0]]
  $region61: #{tpu_custom_call.1} parent=0
    _
  %s9 = ssub.s32 1, %s7
  %s10 = scalar_select 0, %s9, %s7
  $region1: #{tpu_custom_call.1} parent=0
    #allocation2 [shape = 'u8[1024]{0}', space=smem, size = 0x400, scoped, tag = 'input window, operand 0, single buffered']
    #allocation3 [shape = 's32[2]{0}', space=sflag, size = 0x8, scoped, tag = 'scoped memory for tpu_custom_call.1']
    #allocation4 [shape = 's32[2]{0}', space=sflag, size = 0x8, scoped, tag = 'scoped memory for tpu_custom_call.1']
    #allocation5 [shape = 'u8[16384]{0}', space=vmem, size = 0x4000, scoped, tag = 'output window, operand 0']
    %11 = vsyncpa [#allocation4], 0
    %12 = vsyncpa [#allocation3], 0
    %s13 = scalar_lea.sflag [#allocation3], 1
    %14 = vsyncpa %s13, 0
    loop: start=0, step=1, limit=4
    $region2: #{tpu_custom_call.1} parent=1 // loop_pre_header
      _
    $region3: #{tpu_custom_call.1} parent=1 // loop_header
      %s16 = sphi 0, %s20
      %p17 = scmp.ge.s32.totalorder %s16, 4
      %s24 = sphi 0, %s24
      %s26 = sphi 0, %s24
      %s27 = sphi 0, %s26
      %s41 = sphi 0, %s27
      %s47 = sphi 0, %s49
      %s50 = sphi 0, %s47
      %s51 = sphi 0, %s50
      %s67 = sphi 0, %s51
      %s71 = sphi 0, %s71
      %s73 = sphi 0, %s71
      %s74 = sphi 0, %s73
      %s88 = sphi 0, %s74
      %s92 = sphi 0, %s92
      %s94 = sphi 0, %s92
      %s95 = sphi 0, %s94
      %s109 = sphi 0, %s95
      %s113 = sphi 0, %s113
      %s115 = sphi 0, %s113
      %s116 = sphi 0, %s115
      %s130 = sphi 0, %s116
      %s134 = sphi 0, %s134
      %s136 = sphi 0, %s134
      %s137 = sphi 0, %s136
      %s151 = sphi 0, %s137
      %s157 = sphi 0, %s159
      %s160 = sphi 0, %s157
      %s161 = sphi 0, %s160
      %s177 = sphi 0, %s161
    $region4: #{tpu_custom_call.1} parent=1 // loop_header_branch
      %19 = sbr.rel (%p17) target = $region8
    $region5: #{tpu_custom_call.1} parent=1 // loop_body
      %s21 = ssub.s32 %s16, 1
      %s22 = ssub.s32 %s16, 2
      %s23 = sadd.s32 %s16, 1
      %s25 = sadd.s32 %s24, 1
      %p28 = scmp.eq.s32.totalorder %s16, 1
      %p29 = scmp.ne.s32.totalorder %s24, %s26
      %p30 = scmp.eq.s32.totalorder %s16, 0
      %p31 = por %p29, %p30
      %p32 = scmp.ne.s32.totalorder %s24, %s26
      %p33 = scmp.eq.s32.totalorder %s21, 1
      %p34 = por %p32, %p33
      %p35 = scmp.ne.s32.totalorder %s26, %s27
      %p36 = scmp.eq.s32.totalorder %s21, 0
      %p37 = por %p35, %p36
      %p38 = scmp.ne.s32.totalorder %s26, %s27
      %p39 = scmp.eq.s32.totalorder %s22, 1
      %p40 = por %p38, %p39
      %p42 = scmp.ne.s32.totalorder %s27, %s41
      %p43 = scmp.eq.s32.totalorder %s22, 0
      %p44 = por %p42, %p43
      %s45 = ssub.s32 %s16, %s23
      %p46 = scmp.eq.s32.totalorder %s45, 0
      %s48 = sadd.s32 %s47, 1
      %s49 = scalar_select %p46, %s47, %s48
      %p52 = pneg %p46
      %p53 = scmp.eq.s32.totalorder %s16, 1
      %p54 = por %p52, %p53
      %p55 = scmp.ne.s32.totalorder %s47, %s50
      %p56 = scmp.eq.s32.totalorder %s16, 0
      %p57 = por %p55, %p56
      %p58 = scmp.ne.s32.totalorder %s47, %s50
      %p59 = scmp.eq.s32.totalorder %s21, 1
      %p60 = por %p58, %p59
      %p61 = scmp.ne.s32.totalorder %s50, %s51
      %p62 = scmp.eq.s32.totalorder %s21, 0
      %p63 = por %p61, %p62
      %p64 = scmp.ne.s32.totalorder %s50, %s51
      %p65 = scmp.eq.s32.totalorder %s22, 1
      %p66 = por %p64, %p65
      %p68 = scmp.ne.s32.totalorder %s51, %s67
      %p69 = scmp.eq.s32.totalorder %s22, 0
      %p70 = por %p68, %p69
      %s72 = sadd.s32 %s71, 1
      %p75 = scmp.eq.s32.totalorder %s16, 1
      %p76 = scmp.ne.s32.totalorder %s71, %s73
      %p77 = scmp.eq.s32.totalorder %s16, 0
      %p78 = por %p76, %p77
      %p79 = scmp.ne.s32.totalorder %s71, %s73
      %p80 = scmp.eq.s32.totalorder %s21, 1
      %p81 = por %p79, %p80
      %p82 = scmp.ne.s32.totalorder %s73, %s74
      %p83 = scmp.eq.s32.totalorder %s21, 0
      %p84 = por %p82, %p83
      %p85 = scmp.ne.s32.totalorder %s73, %s74
      %p86 = scmp.eq.s32.totalorder %s22, 1
      %p87 = por %p85, %p86
      %p89 = scmp.ne.s32.totalorder %s74, %s88
      %p90 = scmp.eq.s32.totalorder %s22, 0
      %p91 = por %p89, %p90
      %s93 = sadd.s32 %s92, 1
      %p96 = scmp.eq.s32.totalorder %s16, 1
      %p97 = scmp.ne.s32.totalorder %s92, %s94
      %p98 = scmp.eq.s32.totalorder %s16, 0
      %p99 = por %p97, %p98
      %p100 = scmp.ne.s32.totalorder %s92, %s94
      %p101 = scmp.eq.s32.totalorder %s21, 1
      %p102 = por %p100, %p101
      %p103 = scmp.ne.s32.totalorder %s94, %s95
      %p104 = scmp.eq.s32.totalorder %s21, 0
      %p105 = por %p103, %p104
      %p106 = scmp.ne.s32.totalorder %s94, %s95
      %p107 = scmp.eq.s32.totalorder %s22, 1
      %p108 = por %p106, %p107
      %p110 = scmp.ne.s32.totalorder %s95, %s109
      %p111 = scmp.eq.s32.totalorder %s22, 0
      %p112 = por %p110, %p111
      %s114 = sadd.s32 %s113, 1
      %p117 = scmp.eq.s32.totalorder %s16, 1
      %p118 = scmp.ne.s32.totalorder %s113, %s115
      %p119 = scmp.eq.s32.totalorder %s16, 0
      %p120 = por %p118, %p119
      %p121 = scmp.ne.s32.totalorder %s113, %s115
      %p122 = scmp.eq.s32.totalorder %s21, 1
      %p123 = por %p121, %p122
      %p124 = scmp.ne.s32.totalorder %s115, %s116
      %p125 = scmp.eq.s32.totalorder %s21, 0
      %p126 = por %p124, %p125
      %p127 = scmp.ne.s32.totalorder %s115, %s116
      %p128 = scmp.eq.s32.totalorder %s22, 1
      %p129 = por %p127, %p128
      %p131 = scmp.ne.s32.totalorder %s116, %s130
      %p132 = scmp.eq.s32.totalorder %s22, 0
      %p133 = por %p131, %p132
      %s135 = sadd.s32 %s134, 1
      %p138 = scmp.eq.s32.totalorder %s16, 1
      %p139 = scmp.ne.s32.totalorder %s134, %s136
      %p140 = scmp.eq.s32.totalorder %s16, 0
      %p141 = por %p139, %p140
      %p142 = scmp.ne.s32.totalorder %s134, %s136
      %p143 = scmp.eq.s32.totalorder %s21, 1
      %p144 = por %p142, %p143
      %p145 = scmp.ne.s32.totalorder %s136, %s137
      %p146 = scmp.eq.s32.totalorder %s21, 0
      %p147 = por %p145, %p146
      %p148 = scmp.ne.s32.totalorder %s136, %s137
      %p149 = scmp.eq.s32.totalorder %s22, 1
      %p150 = por %p148, %p149
      %p152 = scmp.ne.s32.totalorder %s137, %s151
      %p153 = scmp.eq.s32.totalorder %s22, 0
      %p154 = por %p152, %p153
      %s155 = ssub.s32 %s16, %s23
      %p156 = scmp.eq.s32.totalorder %s155, 0
      %s158 = sadd.s32 %s157, 1
      %s159 = scalar_select %p156, %s157, %s158
      %p162 = pneg %p156
      %p163 = scmp.eq.s32.totalorder %s16, 1
      %p164 = por %p162, %p163
      %p165 = scmp.ne.s32.totalorder %s157, %s160
      %p166 = scmp.eq.s32.totalorder %s16, 0
      %p167 = por %p165, %p166
      %p168 = scmp.ne.s32.totalorder %s157, %s160
      %p169 = scmp.eq.s32.totalorder %s21, 1
      %p170 = por %p168, %p169
      %p171 = scmp.ne.s32.totalorder %s160, %s161
      %p172 = scmp.eq.s32.totalorder %s21, 0
      %p173 = por %p171, %p172
      %p174 = scmp.ne.s32.totalorder %s160, %s161
      %p175 = scmp.eq.s32.totalorder %s22, 1
      %p176 = por %p174, %p175
      %p178 = scmp.ne.s32.totalorder %s161, %s177
      %p179 = scmp.eq.s32.totalorder %s22, 0
      %p180 = por %p178, %p179
      %p181 = scmp.le.s32.totalorder 1, %s16
      %p182 = scmp.lt.s32.totalorder %s16, 3
      %p183 = pnand %p181, %p182
      %p184 = pneg %p183
      // Predicated region
      $region9: #{tpu_custom_call.1} parent=5 // pred_check
        _
      $region10: #{tpu_custom_call.1} parent=5 // pred_check_branch
        %186 = sbr.rel (%p183) target = $region12
      $region11: #{tpu_custom_call.1} parent=5 // pred_region
        %s187 = ssub.s32 %s16, 1
        // Predicated region
        $region13: #{tpu_custom_call.1} parent=11 // pred_check
          %p188 = pneg %p37
        $region14: #{tpu_custom_call.1} parent=11 // pred_check_branch
          %190 = sbr.rel (%p188) target = $region16
        $region15: #{tpu_custom_call.1} parent=11 // pred_region
          %s192 = ssub.s32 32, 32
          %193 = vsyncadd [#allocation4], %s192
          %s195 = sshll.u32 %s0, 4
          %s196 = int_to_ptr.vmem [resolvable:$true] %s195
          %198 = dma.vmem_to_smem %s196, 32, [#allocation2], [#allocation4]
        $region16: #{tpu_custom_call.1} parent=11 // pred_fallthru
          _
        // Predicated region
        $region17: #{tpu_custom_call.1} parent=11 // pred_check
          %p199 = pneg %p84
        $region18: #{tpu_custom_call.1} parent=11 // pred_check_branch
          %201 = sbr.rel (%p199) target = $region20
        $region19: #{tpu_custom_call.1} parent=11 // pred_region
          _
        $region20: #{tpu_custom_call.1} parent=11 // pred_fallthru
          _
        // Predicated region
        $region21: #{tpu_custom_call.1} parent=11 // pred_check
          %p202 = pneg %p105
        $region22: #{tpu_custom_call.1} parent=11 // pred_check_branch
          %204 = sbr.rel (%p202) target = $region24
        $region23: #{tpu_custom_call.1} parent=11 // pred_region
          _
        $region24: #{tpu_custom_call.1} parent=11 // pred_fallthru
          _
        // Predicated region
        $region25: #{tpu_custom_call.1} parent=11 // pred_check
          %p205 = pneg %p126
        $region26: #{tpu_custom_call.1} parent=11 // pred_check_branch
          %207 = sbr.rel (%p205) target = $region28
        $region27: #{tpu_custom_call.1} parent=11 // pred_region
          _
        $region28: #{tpu_custom_call.1} parent=11 // pred_fallthru
          _
        // Predicated region
        $region29: #{tpu_custom_call.1} parent=11 // pred_check
          %p208 = pneg %p147
        $region30: #{tpu_custom_call.1} parent=11 // pred_check_branch
          %210 = sbr.rel (%p208) target = $region32
        $region31: #{tpu_custom_call.1} parent=11 // pred_region
          _
        $region32: #{tpu_custom_call.1} parent=11 // pred_fallthru
          _
      $region12: #{tpu_custom_call.1} parent=5 // pred_fallthru
        _
      %p211 = scmp.lt.s32.totalorder %s16, 2
      // Predicated region
      $region33: #{tpu_custom_call.1} parent=5 // pred_check
        %p212 = pneg %p211
      $region34: #{tpu_custom_call.1} parent=5 // pred_check_branch
        %214 = sbr.rel (%p212) target = $region36
      $region35: #{tpu_custom_call.1} parent=5 // pred_region
        // Predicated region
        $region37: #{tpu_custom_call.1} parent=35 // pred_check
          %p215 = pneg %p57
        $region38: #{tpu_custom_call.1} parent=35 // pred_check_branch
          %217 = sbr.rel (%p215) target = $region40
        $region39: #{tpu_custom_call.1} parent=35 // pred_region
          %p218 = scmp.lt.s32.totalorder %s16, 1
          %s219 = scalar_select %p218, %s16, 1
          %s220 = smul.addr %s219, 2
          %s221 = smul.addr %s220, 8
          %s222 = scalar_lea.vmem %s1, %s221
        $region40: #{tpu_custom_call.1} parent=35 // pred_fallthru
          _
      $region36: #{tpu_custom_call.1} parent=5 // pred_fallthru
        _
      %p223 = scmp.le.s32.totalorder 1, %s16
      %p224 = scmp.lt.s32.totalorder %s16, 3
      %p225 = pnand %p223, %p224
      %p226 = pneg %p225
      // Predicated region
      $region41: #{tpu_custom_call.1} parent=5 // pred_check
        _
      $region42: #{tpu_custom_call.1} parent=5 // pred_check_branch
        %228 = sbr.rel (%p225) target = $region44
      $region43: #{tpu_custom_call.1} parent=5 // pred_region
        %s229 = ssub.s32 %s16, 1
        // Predicated region
        $region45: #{tpu_custom_call.1} parent=43 // pred_check
          %p230 = pneg %p37
        $region46: #{tpu_custom_call.1} parent=43 // pred_check_branch
          %232 = sbr.rel (%p230) target = $region48
        $region47: #{tpu_custom_call.1} parent=43 // pred_region
          %233 = dma.done [#allocation4], 32
        $region48: #{tpu_custom_call.1} parent=43 // pred_fallthru
          _
        %234 = sfence
        %p235 = pneg %p37
        %p236 = pneg %p34
        %p237 = scmp.lt.s32.totalorder %s21, 1
        %s238 = scalar_select %p237, %s21, 1
        %s239 = smul.addr %s238, 2
        %s240 = smul.addr %s239, 8
        %s241 = scalar_lea.vmem %s1, %s240
        %p242 = pneg %p63
        %p243 = pneg %p60
        %p244 = pneg %p84
        %p245 = pneg %p81
        %p246 = pneg %p105
        %p247 = pneg %p102
        %p248 = pneg %p126
        %p249 = pneg %p123
        %p250 = pneg %p147
        %p251 = pneg %p144
        %p252 = pneg %p173
        %p253 = pneg %p170
        %s254 = sand.u32 %s160, 1
        %s255 = scalar_lea.sflag [#allocation3], %s254
        %s256 = sand.u32 %s160, 1
        %s257 = smul.addr %s256, 16
        %s258 = scalar_lea.vmem [#allocation5], %s257
        %p259 = scmp.lt.s32.totalorder %s21, 1
        %s260 = scalar_select %p259, %s21, 1
        %s261 = smul.addr %s260, 2
        %s262 = smul.addr %s261, 8
        %s263 = scalar_lea.vmem %s1, %s262
        %v265 = vld [vmem:[%s263] sm:$0xff]
        %v266 = vld [vmem:[%s263 + $0x8] sm:$0xff]
        %v267 = vpack.c.bf16 %v266, %v265
        %v268 = vld [vmem:[%s2] sm:$0xff]
        %v269 = vld [vmem:[%s2 + $0x8] sm:$0xff]
        %v270 = vld [vmem:[%s2 + $0x10] sm:$0xff]
        %v271 = vld [vmem:[%s2 + $0x18] sm:$0xff]
        %v272 = vld [vmem:[%s2 + $0x20] sm:$0xff]
        %v273 = vld [vmem:[%s2 + $0x28] sm:$0xff]
        %v274 = vld [vmem:[%s2 + $0x30] sm:$0xff]
        %v275 = vld [vmem:[%s2 + $0x38] sm:$0xff]
        %v276 = vld [vmem:[%s2 + $0x40] sm:$0xff]
        %v277 = vld [vmem:[%s2 + $0x48] sm:$0xff]
        %v278 = vld [vmem:[%s2 + $0x50] sm:$0xff]
        %v279 = vld [vmem:[%s2 + $0x58] sm:$0xff]
        %v280 = vld [vmem:[%s2 + $0x60] sm:$0xff]
        %v281 = vld [vmem:[%s2 + $0x68] sm:$0xff]
        %v282 = vld [vmem:[%s2 + $0x70] sm:$0xff]
        %v283 = vld [vmem:[%s2 + $0x78] sm:$0xff]
        %v284 = vld [vmem:[%s2 + $0x80] sm:$0xff]
        %v285 = vld [vmem:[%s2 + $0x88] sm:$0xff]
        %v286 = vld [vmem:[%s2 + $0x90] sm:$0xff]
        %v287 = vld [vmem:[%s2 + $0x98] sm:$0xff]
        %v288 = vld [vmem:[%s2 + $0xa0] sm:$0xff]
        %v289 = vld [vmem:[%s2 + $0xa8] sm:$0xff]
        %v290 = vld [vmem:[%s2 + $0xb0] sm:$0xff]
        %v291 = vld [vmem:[%s2 + $0xb8] sm:$0xff]
        %v316 = vunpack.c.l.b16 %v268
        %v317 = vunpack.c.h.b16 %v268
        %v318 = vunpack.c.l.b16 %v269
        %v319 = vunpack.c.h.b16 %v269
        %v320 = vunpack.c.l.b16 %v270
        %v321 = vunpack.c.h.b16 %v270
        %v322 = vunpack.c.l.b16 %v271
        %v323 = vunpack.c.h.b16 %v271
        %v324 = vunpack.c.l.b16 %v272
        %v325 = vunpack.c.h.b16 %v272
        %v326 = vunpack.c.l.b16 %v273
        %v327 = vunpack.c.h.b16 %v273
        %v328 = vunpack.c.l.b16 %v274
        %v329 = vunpack.c.h.b16 %v274
        %v330 = vunpack.c.l.b16 %v275
        %v331 = vunpack.c.h.b16 %v275
        %v332 = vunpack.c.l.b16 %v276
        %v333 = vunpack.c.h.b16 %v276
        %v334 = vunpack.c.l.b16 %v277
        %v335 = vunpack.c.h.b16 %v277
        %v336 = vunpack.c.l.b16 %v278
        %v337 = vunpack.c.h.b16 %v278
        %v338 = vunpack.c.l.b16 %v279
        %v339 = vunpack.c.h.b16 %v279
        %v340 = vunpack.c.l.b16 %v280
        %v341 = vunpack.c.h.b16 %v280
        %v342 = vunpack.c.l.b16 %v281
        %v343 = vunpack.c.h.b16 %v281
        %v344 = vunpack.c.l.b16 %v282
        %v345 = vunpack.c.h.b16 %v282
        %v346 = vunpack.c.l.b16 %v283
        %v347 = vunpack.c.h.b16 %v283
        %v348 = vunpack.c.l.b16 %v284
        %v349 = vunpack.c.h.b16 %v284
        %v350 = vunpack.c.l.b16 %v285
        %v351 = vunpack.c.h.b16 %v285
        %v352 = vunpack.c.l.b16 %v286
        %v353 = vunpack.c.h.b16 %v286
        %v354 = vunpack.c.l.b16 %v287
        %v355 = vunpack.c.h.b16 %v287
        %v356 = vunpack.c.l.b16 %v288
        %v357 = vunpack.c.h.b16 %v288
        %v358 = vunpack.c.l.b16 %v289
        %v359 = vunpack.c.h.b16 %v289
        %v360 = vunpack.c.l.b16 %v290
        %v361 = vunpack.c.h.b16 %v290
        %v362 = vunpack.c.l.b16 %v291
        %v363 = vunpack.c.h.b16 %v291
        %v364 = vpack.c.b16 %v328, %v316
        %v365 = vpack.c.b16 %v329, %v317
        %v366 = vpack.c.b16 %v330, %v318
        %v367 = vpack.c.b16 %v331, %v319
        %v368 = vpack.c.b16 %v332, %v320
        %v369 = vpack.c.b16 %v333, %v321
        %v370 = vpack.c.b16 %v334, %v322
        %v371 = vpack.c.b16 %v335, %v323
        %v372 = vpack.c.b16 %v336, %v324
        %v373 = vpack.c.b16 %v337, %v325
        %v374 = vpack.c.b16 %v338, %v326
        %v375 = vpack.c.b16 %v339, %v327
        %v376 = vpack.c.b16 %v352, %v340
        %v377 = vpack.c.b16 %v353, %v341
        %v378 = vpack.c.b16 %v354, %v342
        %v379 = vpack.c.b16 %v355, %v343
        %v380 = vpack.c.b16 %v356, %v344
        %v381 = vpack.c.b16 %v357, %v345
        %v382 = vpack.c.b16 %v358, %v346
        %v383 = vpack.c.b16 %v359, %v347
        %v384 = vpack.c.b16 %v360, %v348
        %v385 = vpack.c.b16 %v361, %v349
        %v386 = vpack.c.b16 %v362, %v350
        %v387 = vpack.c.b16 %v363, %v351
        %vm412 = vcmask 261120
        %v414 = vsel %vm412, %v267, 0
        %416 = vmatprep.subr.bf16.mxu0 %v365
        %417 = vmatpush1.bf16.msra.mxu0 %v364
        %418 = vmatprep.subr.bf16.mxu0 %v377
        %419 = vmatpush1.bf16.msra.mxu0 %v376
        %420 = vmatprep.subr.bf16.mxu0 0
        %421 = vmatpush1.bf16.msra.mxu0 0
        %422 = vmatprep.subr.bf16.mxu0 0
        %423 = vmatpush1.bf16.msra.mxu0 0
        %424 = vmatprep.subr.bf16.mxu0 0
        %425 = vmatpush1.bf16.msra.mxu0 0
        %426 = vmatprep.subr.bf16.mxu0 0
        %427 = vmatpush1.bf16.msra.mxu0 0
        %428 = vmatprep.subr.bf16.mxu0 0
        %429 = vmatpush1.bf16.msra.mxu0 0
        %430 = vmatprep.subr.bf16.mxu0 0
        %431 = vmatpush1.bf16.msra.mxu0 0
        %432 = vmatprep.subr.bf16.mxu0 0
        %433 = vmatpush1.bf16.msra.mxu0 0
        %434 = vmatprep.subr.bf16.mxu0 0
        %435 = vmatpush1.bf16.msra.mxu0 0
        %436 = vmatprep.subr.bf16.mxu0 0
        %437 = vmatpush1.bf16.msra.mxu0 0
        %438 = vmatprep.subr.bf16.mxu0 0
        %439 = vmatpush1.bf16.msra.mxu0 0
        %440 = vmatprep.subr.bf16.mxu0 0
        %441 = vmatpush1.bf16.msra.mxu0 0
        %442 = vmatprep.subr.bf16.mxu0 0
        %443 = vmatpush1.bf16.msra.mxu0 0
        %444 = vmatprep.subr.bf16.mxu0 0
        %445 = vmatpush1.bf16.msra.mxu0 0
        %446 = vmatprep.subr.bf16.mxu0 0
        %447 = vmatpush1.bf16.msra.mxu0 0
        %448 = vmatprep.mubr.bf16.mxu0 0
        %449 = vmatmul.mubr.bf16.gmra.mrb[0].mxu0 %v414
        %v450 = vpop.f32.mrb[0].mxu0
        %v451 = vadd.f32 0.0, %v450
        %v452 = vpop.f32.mrb[0].mxu0
        %v453 = vadd.f32 0.0, %v452
        %v454 = vpop.f32.mrb[0].mxu0
        %v455 = vadd.f32 0.0, %v454
        %v456 = vpop.f32.mrb[0].mxu0
        %v457 = vadd.f32 0.0, %v456
        %458 = vdwg.mxu0
        %459 = vmatprep.subr.bf16.mxu0 %v367
        %460 = vmatpush1.bf16.msra.mxu0 %v366
        %461 = vmatprep.subr.bf16.mxu0 %v379
        %462 = vmatpush1.bf16.msra.mxu0 %v378
        %463 = vmatprep.subr.bf16.mxu0 0
        %464 = vmatpush1.bf16.msra.mxu0 0
        %465 = vmatprep.subr.bf16.mxu0 0
        %466 = vmatpush1.bf16.msra.mxu0 0
        %467 = vmatprep.subr.bf16.mxu0 0
        %468 = vmatpush1.bf16.msra.mxu0 0
        %469 = vmatprep.subr.bf16.mxu0 0
        %470 = vmatpush1.bf16.msra.mxu0 0
        %471 = vmatprep.subr.bf16.mxu0 0
        %472 = vmatpush1.bf16.msra.mxu0 0
        %473 = vmatprep.subr.bf16.mxu0 0
        %474 = vmatpush1.bf16.msra.mxu0 0
        %475 = vmatprep.subr.bf16.mxu0 0
        %476 = vmatpush1.bf16.msra.mxu0 0
        %477 = vmatprep.subr.bf16.mxu0 0
        %478 = vmatpush1.bf16.msra.mxu0 0
        %479 = vmatprep.subr.bf16.mxu0 0
        %480 = vmatpush1.bf16.msra.mxu0 0
        %481 = vmatprep.subr.bf16.mxu0 0
        %482 = vmatpush1.bf16.msra.mxu0 0
        %483 = vmatprep.subr.bf16.mxu0 0
        %484 = vmatpush1.bf16.msra.mxu0 0
        %485 = vmatprep.subr.bf16.mxu0 0
        %486 = vmatpush1.bf16.msra.mxu0 0
        %487 = vmatprep.subr.bf16.mxu0 0
        %488 = vmatpush1.bf16.msra.mxu0 0
        %489 = vmatprep.subr.bf16.mxu0 0
        %490 = vmatpush1.bf16.msra.mxu0 0
        %491 = vmatprep.mubr.bf16.mxu0 0
        %492 = vmatmul.mubr.bf16.gmra.mrb[0].mxu0 %v414
        %v493 = vpop.f32.mrb[0].mxu0
        %v494 = vadd.f32 0.0, %v493
        %v495 = vpop.f32.mrb[0].mxu0
        %v496 = vadd.f32 0.0, %v495
        %v497 = vpop.f32.mrb[0].mxu0
        %v498 = vadd.f32 0.0, %v497
        %v499 = vpop.f32.mrb[0].mxu0
        %v500 = vadd.f32 0.0, %v499
        %501 = vdwg.mxu0
        %502 = vmatprep.subr.bf16.mxu0 %v369
        %503 = vmatpush1.bf16.msra.mxu0 %v368
        %504 = vmatprep.subr.bf16.mxu0 %v381
        %505 = vmatpush1.bf16.msra.mxu0 %v380
        %506 = vmatprep.subr.bf16.mxu0 0
        %507 = vmatpush1.bf16.msra.mxu0 0
        %508 = vmatprep.subr.bf16.mxu0 0
        %509 = vmatpush1.bf16.msra.mxu0 0
        %510 = vmatprep.subr.bf16.mxu0 0
        %511 = vmatpush1.bf16.msra.mxu0 0
        %512 = vmatprep.subr.bf16.mxu0 0
        %513 = vmatpush1.bf16.msra.mxu0 0
        %514 = vmatprep.subr.bf16.mxu0 0
        %515 = vmatpush1.bf16.msra.mxu0 0
        %516 = vmatprep.subr.bf16.mxu0 0
        %517 = vmatpush1.bf16.msra.mxu0 0
        %518 = vmatprep.subr.bf16.mxu0 0
        %519 = vmatpush1.bf16.msra.mxu0 0
        %520 = vmatprep.subr.bf16.mxu0 0
        %521 = vmatpush1.bf16.msra.mxu0 0
        %522 = vmatprep.subr.bf16.mxu0 0
        %523 = vmatpush1.bf16.msra.mxu0 0
        %524 = vmatprep.subr.bf16.mxu0 0
        %525 = vmatpush1.bf16.msra.mxu0 0
        %526 = vmatprep.subr.bf16.mxu0 0
        %527 = vmatpush1.bf16.msra.mxu0 0
        %528 = vmatprep.subr.bf16.mxu0 0
        %529 = vmatpush1.bf16.msra.mxu0 0
        %530 = vmatprep.subr.bf16.mxu0 0
        %531 = vmatpush1.bf16.msra.mxu0 0
        %532 = vmatprep.subr.bf16.mxu0 0
        %533 = vmatpush1.bf16.msra.mxu0 0
        %534 = vmatprep.mubr.bf16.mxu0 0
        %535 = vmatmul.mubr.bf16.gmra.mrb[0].mxu0 %v414
        %v536 = vpop.f32.mrb[0].mxu0
        %v537 = vadd.f32 0.0, %v536
        %v538 = vpop.f32.mrb[0].mxu0
        %v539 = vadd.f32 0.0, %v538
        %v540 = vpop.f32.mrb[0].mxu0
        %v541 = vadd.f32 0.0, %v540
        %v542 = vpop.f32.mrb[0].mxu0
        %v543 = vadd.f32 0.0, %v542
        %544 = vdwg.mxu0
        %545 = vmatprep.subr.bf16.mxu0 %v371
        %546 = vmatpush1.bf16.msra.mxu0 %v370
        %547 = vmatprep.subr.bf16.mxu0 %v383
        %548 = vmatpush1.bf16.msra.mxu0 %v382
        %549 = vmatprep.subr.bf16.mxu0 0
        %550 = vmatpush1.bf16.msra.mxu0 0
        %551 = vmatprep.subr.bf16.mxu0 0
        %552 = vmatpush1.bf16.msra.mxu0 0
        %553 = vmatprep.subr.bf16.mxu0 0
        %554 = vmatpush1.bf16.msra.mxu0 0
        %555 = vmatprep.subr.bf16.mxu0 0
        %556 = vmatpush1.bf16.msra.mxu0 0
        %557 = vmatprep.subr.bf16.mxu0 0
        %558 = vmatpush1.bf16.msra.mxu0 0
        %559 = vmatprep.subr.bf16.mxu0 0
        %560 = vmatpush1.bf16.msra.mxu0 0
        %561 = vmatprep.subr.bf16.mxu0 0
        %562 = vmatpush1.bf16.msra.mxu0 0
        %563 = vmatprep.subr.bf16.mxu0 0
        %564 = vmatpush1.bf16.msra.mxu0 0
        %565 = vmatprep.subr.bf16.mxu0 0
        %566 = vmatpush1.bf16.msra.mxu0 0
        %567 = vmatprep.subr.bf16.mxu0 0
        %568 = vmatpush1.bf16.msra.mxu0 0
        %569 = vmatprep.subr.bf16.mxu0 0
        %570 = vmatpush1.bf16.msra.mxu0 0
        %571 = vmatprep.subr.bf16.mxu0 0
        %572 = vmatpush1.bf16.msra.mxu0 0
        %573 = vmatprep.subr.bf16.mxu0 0
        %574 = vmatpush1.bf16.msra.mxu0 0
        %575 = vmatprep.subr.bf16.mxu0 0
        %576 = vmatpush1.bf16.msra.mxu0 0
        %577 = vmatprep.mubr.bf16.mxu0 0
        %578 = vmatmul.mubr.bf16.gmra.mrb[0].mxu0 %v414
        %v579 = vpop.f32.mrb[0].mxu0
        %v580 = vadd.f32 0.0, %v579
        %v581 = vpop.f32.mrb[0].mxu0
        %v582 = vadd.f32 0.0, %v581
        %v583 = vpop.f32.mrb[0].mxu0
        %v584 = vadd.f32 0.0, %v583
        %v585 = vpop.f32.mrb[0].mxu0
        %v586 = vadd.f32 0.0, %v585
        %587 = vdwg.mxu0
        %588 = vmatprep.subr.bf16.mxu0 %v373
        %589 = vmatpush1.bf16.msra.mxu0 %v372
        %590 = vmatprep.subr.bf16.mxu0 %v385
        %591 = vmatpush1.bf16.msra.mxu0 %v384
        %592 = vmatprep.subr.bf16.mxu0 0
        %593 = vmatpush1.bf16.msra.mxu0 0
        %594 = vmatprep.subr.bf16.mxu0 0
        %595 = vmatpush1.bf16.msra.mxu0 0
        %596 = vmatprep.subr.bf16.mxu0 0
        %597 = vmatpush1.bf16.msra.mxu0 0
        %598 = vmatprep.subr.bf16.mxu0 0
        %599 = vmatpush1.bf16.msra.mxu0 0
        %600 = vmatprep.subr.bf16.mxu0 0
        %601 = vmatpush1.bf16.msra.mxu0 0
        %602 = vmatprep.subr.bf16.mxu0 0
        %603 = vmatpush1.bf16.msra.mxu0 0
        %604 = vmatprep.subr.bf16.mxu0 0
        %605 = vmatpush1.bf16.msra.mxu0 0
        %606 = vmatprep.subr.bf16.mxu0 0
        %607 = vmatpush1.bf16.msra.mxu0 0
        %608 = vmatprep.subr.bf16.mxu0 0
        %609 = vmatpush1.bf16.msra.mxu0 0
        %610 = vmatprep.subr.bf16.mxu0 0
        %611 = vmatpush1.bf16.msra.mxu0 0
        %612 = vmatprep.subr.bf16.mxu0 0
        %613 = vmatpush1.bf16.msra.mxu0 0
        %614 = vmatprep.subr.bf16.mxu0 0
        %615 = vmatpush1.bf16.msra.mxu0 0
        %616 = vmatprep.subr.bf16.mxu0 0
        %617 = vmatpush1.bf16.msra.mxu0 0
        %618 = vmatprep.subr.bf16.mxu0 0
        %619 = vmatpush1.bf16.msra.mxu0 0
        %620 = vmatprep.mubr.bf16.mxu0 0
        %621 = vmatmul.mubr.bf16.gmra.mrb[0].mxu0 %v414
        %v622 = vpop.f32.mrb[0].mxu0
        %v623 = vadd.f32 0.0, %v622
        %v624 = vpop.f32.mrb[0].mxu0
        %v625 = vadd.f32 0.0, %v624
        %v626 = vpop.f32.mrb[0].mxu0
        %v627 = vadd.f32 0.0, %v626
        %v628 = vpop.f32.mrb[0].mxu0
        %v629 = vadd.f32 0.0, %v628
        %630 = vdwg.mxu0
        %631 = vmatprep.subr.bf16.mxu0 %v375
        %632 = vmatpush1.bf16.msra.mxu0 %v374
        %633 = vmatprep.subr.bf16.mxu0 %v387
        %634 = vmatpush1.bf16.msra.mxu0 %v386
        %635 = vmatprep.subr.bf16.mxu0 0
        %636 = vmatpush1.bf16.msra.mxu0 0
        %637 = vmatprep.subr.bf16.mxu0 0
        %638 = vmatpush1.bf16.msra.mxu0 0
        %639 = vmatprep.subr.bf16.mxu0 0
        %640 = vmatpush1.bf16.msra.mxu0 0
        %641 = vmatprep.subr.bf16.mxu0 0
        %642 = vmatpush1.bf16.msra.mxu0 0
        %643 = vmatprep.subr.bf16.mxu0 0
        %644 = vmatpush1.bf16.msra.mxu0 0
        %645 = vmatprep.subr.bf16.mxu0 0
        %646 = vmatpush1.bf16.msra.mxu0 0
        %647 = vmatprep.subr.bf16.mxu0 0
        %648 = vmatpush1.bf16.msra.mxu0 0
        %649 = vmatprep.subr.bf16.mxu0 0
        %650 = vmatpush1.bf16.msra.mxu0 0
        %651 = vmatprep.subr.bf16.mxu0 0
        %652 = vmatpush1.bf16.msra.mxu0 0
        %653 = vmatprep.subr.bf16.mxu0 0
        %654 = vmatpush1.bf16.msra.mxu0 0
        %655 = vmatprep.subr.bf16.mxu0 0
        %656 = vmatpush1.bf16.msra.mxu0 0
        %657 = vmatprep.subr.bf16.mxu0 0
        %658 = vmatpush1.bf16.msra.mxu0 0
        %659 = vmatprep.subr.bf16.mxu0 0
        %660 = vmatpush1.bf16.msra.mxu0 0
        %661 = vmatprep.subr.bf16.mxu0 0
        %662 = vmatpush1.bf16.msra.mxu0 0
        %663 = vmatprep.mubr.bf16.mxu0 0
        %664 = vmatmul.mubr.bf16.gmra.mrb[0].mxu0 %v414
        %v665 = vpop.f32.mrb[0].mxu0
        %v666 = vadd.f32 0.0, %v665
        %v667 = vpop.f32.mrb[0].mxu0
        %v668 = vadd.f32 0.0, %v667
        %v669 = vpop.f32.mrb[0].mxu0
        %v670 = vadd.f32 0.0, %v669
        %v671 = vpop.f32.mrb[0].mxu0
        %v672 = vadd.f32 0.0, %v671
        %673 = vdwg.mxu0
        %v674 = vpack.c.bf16 %v455, %v451
        %v675 = vpack.c.bf16 %v541, %v537
        %v676 = vpack.c.bf16 %v627, %v623
        %677 = vmatprep.subr.bf16.mxu0 0
        %678 = vmatpush1.bf16.xpose.msra.mxu0 %v675
        %679 = vmatprep.subr.bf16.mxu0 0
        %680 = vmatpush1.bf16.xpose.msra.mxu0 0
        %681 = vmatprep.subr.bf16.mxu0 0
        %682 = vmatpush1.bf16.xpose.msra.mxu0 0
        %683 = vmatprep.subr.bf16.mxu0 0
        %684 = vmatpush1.bf16.xpose.msra.mxu0 0
        %685 = vmatprep.subr.bf16.mxu0 0
        %686 = vmatpush1.bf16.xpose.msra.mxu0 0
        %687 = vmatprep.subr.bf16.mxu0 0
        %688 = vmatpush1.bf16.xpose.msra.mxu0 0
        %689 = vmatprep.subr.bf16.mxu0 0
        %690 = vmatpush1.bf16.xpose.msra.mxu0 0
        %691 = vmatprep.subr.bf16.mxu0 0
        %692 = vmatpush1.bf16.xpose.msra.mxu0 0
        %693 = vmatprep.subr.bf16.mxu0 0
        %694 = vmatpush1.bf16.xpose.msra.mxu0 0
        %695 = vmatprep.subr.bf16.mxu0 0
        %696 = vmatpush1.bf16.xpose.msra.mxu0 0
        %697 = vmatprep.subr.bf16.mxu0 0
        %698 = vmatpush1.bf16.xpose.msra.mxu0 0
        %699 = vmatprep.subr.bf16.mxu0 0
        %700 = vmatpush1.bf16.xpose.msra.mxu0 0
        %701 = vmatprep.subr.bf16.mxu0 0
        %702 = vmatpush1.bf16.xpose.msra.mxu0 0
        %703 = vmatprep.subr.bf16.mxu0 0
        %704 = vmatpush1.bf16.xpose.msra.mxu0 0
        %705 = vmatprep.subr.bf16.mxu0 0
        %706 = vmatpush1.bf16.xpose.msra.mxu0 0
        %707 = vmatprep.subr.bf16.mxu0 0
        %708 = vmatpush1.bf16.xpose.msra.mxu0 0
        %709 = vmatprep.mubr.bf16.mxu0 0
        %710 = vmatmul.mubr.bf16.gmra.mrb[0].mxu0 %v674
        %v711 = vpop.f32.mrb[0].mxu0
        %v712 = vadd.f32 0.0, %v711
        %v713 = vpop.f32.mrb[0].mxu0
        %v714 = vpop.f32.mrb[0].mxu0
        %v715 = vadd.f32 0.0, %v714
        %v716 = vpop.f32.mrb[0].mxu0
        %717 = vdwg.mxu0
        %vm718 = vcmask 130048
        %v719 = vsel %vm718, %v712, -inf
        %720 = vmax.xlane.f32.xlu0 %v719
        %v721 = vpop.xlane.xlu0 %720
        %v722 = vsel %vm718, %v715, -inf
        %723 = vmax.xlane.f32.xlu0 %v722
        %v724 = vpop.xlane.xlu0 %723
        %v725 = vsub.f32 %v712, %v721
        %v726 = vsub.f32 %v715, %v724
        %v727 = vmul.f32 %v725, 1.442695
        %v728 = vpow.pop %v727
        %v729 = vmul.f32 %v726, 1.442695
        %v730 = vpow.pop %v729
        %v731 = vsel %vm718, %v728, 0.0
        %732 = vadd.xlane.f32.xlu0 %v731
        %v733 = vpop.xlane.xlu0 %732
        %v734 = vsel %vm718, %v730, 0.0
        %735 = vadd.xlane.f32.xlu0 %v734
        %v736 = vpop.xlane.xlu0 %735
        %v737 = vrcp.pop %v733
        %v738 = vrcp.pop %v736
        %s739 = sld [smem:[#allocation2]]
        %s740 = sld [smem:[#allocation2 + $0x80]]
        %v741 = vstv %s739
        %v742 = vmul.f32 %v737, %v741
        %v743 = vmul.f32 %v738, %v741
        %v744 = vmul.f32 %v728, %v742
        %v745 = vmul.f32 %v730, %v743
        %v746 = vld [vmem:[%s3] sm:$0xff]
        %v747 = vld [vmem:[%s3 + $0x8] sm:$0xff]
        %v748 = vadd.f32 %v744, %v746
        %v749 = vadd.f32 %v745, %v747
        %v750 = vmul.f32 %v733, %v737
        %v751 = vmul.f32 %v736, %v738
        %v752 = vmul.f32 %v741, %v750
        %v753 = vmul.f32 %v741, %v751
        %v754 = vstv %s740
        %v755 = vadd.f32 %v752, %v754
        %v756 = vadd.f32 %v753, %v754
        %v757 = vrcp.pop %v755
        %v758 = vmul.f32 1.0, %v757
        %v759 = vrcp.pop %v756
        %v760 = vmul.f32 1.0, %v759
        %v761 = vmul.f32 %v748, %v758
        %v762 = vmul.f32 %v749, %v760
        %v763 = vpack.c.bf16 %v762, %v761
        %v765 = vsel %vm718, %v763, 0
        %767 = vmatprep.subr.bf16.mxu0 0
        %768 = vmatpush1.bf16.msra.mxu0 %v676
        %769 = vmatprep.subr.bf16.mxu0 0
        %770 = vmatpush1.bf16.msra.mxu0 0
        %771 = vmatprep.subr.bf16.mxu0 0
        %772 = vmatpush1.bf16.msra.mxu0 0
        %773 = vmatprep.subr.bf16.mxu0 0
        %774 = vmatpush1.bf16.msra.mxu0 0
        %775 = vmatprep.subr.bf16.mxu0 0
        %776 = vmatpush1.bf16.msra.mxu0 0
        %777 = vmatprep.subr.bf16.mxu0 0
        %778 = vmatpush1.bf16.msra.mxu0 0
        %779 = vmatprep.subr.bf16.mxu0 0
        %780 = vmatpush1.bf16.msra.mxu0 0
        %781 = vmatprep.subr.bf16.mxu0 0
        %782 = vmatpush1.bf16.msra.mxu0 0
        %783 = vmatprep.subr.bf16.mxu0 0
        %784 = vmatpush1.bf16.msra.mxu0 0
        %785 = vmatprep.subr.bf16.mxu0 0
        %786 = vmatpush1.bf16.msra.mxu0 0
        %787 = vmatprep.subr.bf16.mxu0 0
        %788 = vmatpush1.bf16.msra.mxu0 0
        %789 = vmatprep.subr.bf16.mxu0 0
        %790 = vmatpush1.bf16.msra.mxu0 0
        %791 = vmatprep.subr.bf16.mxu0 0
        %792 = vmatpush1.bf16.msra.mxu0 0
        %793 = vmatprep.subr.bf16.mxu0 0
        %794 = vmatpush1.bf16.msra.mxu0 0
        %795 = vmatprep.subr.bf16.mxu0 0
        %796 = vmatpush1.bf16.msra.mxu0 0
        %797 = vmatprep.subr.bf16.mxu0 0
        %798 = vmatpush1.bf16.msra.mxu0 0
        %799 = vmatprep.mubr.bf16.mxu0 0
        %800 = vmatmul.mubr.bf16.gmra.mrb[0].mxu0 %v765
        %v801 = vpop.f32.mrb[0].mxu0
        %v802 = vadd.f32 0.0, %v801
        %v803 = vpop.f32.mrb[0].mxu0
        %v804 = vpop.f32.mrb[0].mxu0
        %v805 = vadd.f32 0.0, %v804
        %v806 = vpop.f32.mrb[0].mxu0
        %807 = vdwg.mxu0
        %v808 = vpack.c.bf16 %v805, %v802
        %v809 = vld [vmem:[%s4] sm:$0xf]
        %v810 = vld [vmem:[%s4 + $0x4] sm:$0xf]
        %v811 = vld [vmem:[%s4 + $0x8] sm:$0xf]
        %v812 = vld [vmem:[%s4 + $0xc] sm:$0xf]
        %v813 = vld [vmem:[%s4 + $0x10] sm:$0xf]
        %v814 = vld [vmem:[%s4 + $0x14] sm:$0xf]
        %v815 = vld [vmem:[%s4 + $0x18] sm:$0xf]
        %v816 = vld [vmem:[%s4 + $0x1c] sm:$0xf]
        %v817 = vld [vmem:[%s4 + $0x20] sm:$0xf]
        %v818 = vld [vmem:[%s4 + $0x24] sm:$0xf]
        %v819 = vld [vmem:[%s4 + $0x28] sm:$0xf]
        %v820 = vld [vmem:[%s4 + $0x2c] sm:$0xf]
        %v821 = vld [vmem:[%s4 + $0x30] sm:$0xf]
        %v822 = vld [vmem:[%s4 + $0x34] sm:$0xf]
        %v823 = vld [vmem:[%s4 + $0x38] sm:$0xf]
        %v824 = vld [vmem:[%s4 + $0x3c] sm:$0xf]
        %v825 = vpack.c.bf16 %v457, %v453
        %v826 = vpack.c.bf16 %v543, %v539
        %v827 = vpack.c.bf16 %v629, %v625
        %828 = vmatprep.subr.bf16.mxu0 0
        %829 = vmatpush1.bf16.xpose.msra.mxu0 %v826
        %830 = vmatprep.subr.bf16.mxu0 0
        %831 = vmatpush1.bf16.xpose.msra.mxu0 0
        %832 = vmatprep.subr.bf16.mxu0 0
        %833 = vmatpush1.bf16.xpose.msra.mxu0 0
        %834 = vmatprep.subr.bf16.mxu0 0
        %835 = vmatpush1.bf16.xpose.msra.mxu0 0
        %836 = vmatprep.subr.bf16.mxu0 0
        %837 = vmatpush1.bf16.xpose.msra.mxu0 0
        %838 = vmatprep.subr.bf16.mxu0 0
        %839 = vmatpush1.bf16.xpose.msra.mxu0 0
        %840 = vmatprep.subr.bf16.mxu0 0
        %841 = vmatpush1.bf16.xpose.msra.mxu0 0
        %842 = vmatprep.subr.bf16.mxu0 0
        %843 = vmatpush1.bf16.xpose.msra.mxu0 0
        %844 = vmatprep.subr.bf16.mxu0 0
        %845 = vmatpush1.bf16.xpose.msra.mxu0 0
        %846 = vmatprep.subr.bf16.mxu0 0
        %847 = vmatpush1.bf16.xpose.msra.mxu0 0
        %848 = vmatprep.subr.bf16.mxu0 0
        %849 = vmatpush1.bf16.xpose.msra.mxu0 0
        %850 = vmatprep.subr.bf16.mxu0 0
        %851 = vmatpush1.bf16.xpose.msra.mxu0 0
        %852 = vmatprep.subr.bf16.mxu0 0
        %853 = vmatpush1.bf16.xpose.msra.mxu0 0
        %854 = vmatprep.subr.bf16.mxu0 0
        %855 = vmatpush1.bf16.xpose.msra.mxu0 0
        %856 = vmatprep.subr.bf16.mxu0 0
        %857 = vmatpush1.bf16.xpose.msra.mxu0 0
        %858 = vmatprep.subr.bf16.mxu0 0
        %859 = vmatpush1.bf16.xpose.msra.mxu0 0
        %860 = vmatprep.mubr.bf16.mxu0 0
        %861 = vmatmul.mubr.bf16.gmra.mrb[0].mxu0 %v825
        %v862 = vpop.f32.mrb[0].mxu0
        %v863 = vadd.f32 0.0, %v862
        %v864 = vpop.f32.mrb[0].mxu0
        %v865 = vpop.f32.mrb[0].mxu0
        %v866 = vadd.f32 0.0, %v865
        %v867 = vpop.f32.mrb[0].mxu0
        %868 = vdwg.mxu0
        %v869 = vsel %vm718, %v863, -inf
        %870 = vmax.xlane.f32.xlu0 %v869
        %v871 = vpop.xlane.xlu0 %870
        %v872 = vsel %vm718, %v866, -inf
        %873 = vmax.xlane.f32.xlu0 %v872
        %v874 = vpop.xlane.xlu0 %873
        %v875 = vsub.f32 %v863, %v871
        %v876 = vsub.f32 %v866, %v874
        %v877 = vmul.f32 %v875, 1.442695
        %v878 = vpow.pop %v877
        %v879 = vmul.f32 %v876, 1.442695
        %v880 = vpow.pop %v879
        %v881 = vsel %vm718, %v878, 0.0
        %882 = vadd.xlane.f32.xlu0 %v881
        %v883 = vpop.xlane.xlu0 %882
        %v884 = vsel %vm718, %v880, 0.0
        %885 = vadd.xlane.f32.xlu0 %v884
        %v886 = vpop.xlane.xlu0 %885
        %v887 = vrcp.pop %v883
        %v888 = vrcp.pop %v886
        %s889 = sld [smem:[#allocation2 + $0x1]]
        %s890 = sld [smem:[#allocation2 + $0x81]]
        %v891 = vstv %s889
        %v892 = vmul.f32 %v887, %v891
        %v893 = vmul.f32 %v888, %v891
        %v894 = vmul.f32 %v878, %v892
        %v895 = vmul.f32 %v880, %v893
        %s896 = scalar_lea.vmem %s3, 16
        %v897 = vld [vmem:[%s896] sm:$0xff]
        %v898 = vld [vmem:[%s896 + $0x8] sm:$0xff]
        %v899 = vadd.f32 %v894, %v897
        %v900 = vadd.f32 %v895, %v898
        %v901 = vmul.f32 %v883, %v887
        %v902 = vmul.f32 %v886, %v888
        %v903 = vmul.f32 %v891, %v901
        %v904 = vmul.f32 %v891, %v902
        %v905 = vstv %s890
        %v906 = vadd.f32 %v903, %v905
        %v907 = vadd.f32 %v904, %v905
        %v908 = vrcp.pop %v906
        %v909 = vmul.f32 1.0, %v908
        %v910 = vrcp.pop %v907
        %v911 = vmul.f32 1.0, %v910
        %v912 = vmul.f32 %v899, %v909
        %v913 = vmul.f32 %v900, %v911
        %v914 = vpack.c.bf16 %v913, %v912
        %v916 = vsel %vm718, %v914, 0
        %918 = vmatprep.subr.bf16.mxu0 0
        %919 = vmatpush1.bf16.msra.mxu0 %v827
        %920 = vmatprep.subr.bf16.mxu0 0
        %921 = vmatpush1.bf16.msra.mxu0 0
        %922 = vmatprep.subr.bf16.mxu0 0
        %923 = vmatpush1.bf16.msra.mxu0 0
        %924 = vmatprep.subr.bf16.mxu0 0
        %925 = vmatpush1.bf16.msra.mxu0 0
        %926 = vmatprep.subr.bf16.mxu0 0
        %927 = vmatpush1.bf16.msra.mxu0 0
        %928 = vmatprep.subr.bf16.mxu0 0
        %929 = vmatpush1.bf16.msra.mxu0 0
        %930 = vmatprep.subr.bf16.mxu0 0
        %931 = vmatpush1.bf16.msra.mxu0 0
        %932 = vmatprep.subr.bf16.mxu0 0
        %933 = vmatpush1.bf16.msra.mxu0 0
        %934 = vmatprep.subr.bf16.mxu0 0
        %935 = vmatpush1.bf16.msra.mxu0 0
        %936 = vmatprep.subr.bf16.mxu0 0
        %937 = vmatpush1.bf16.msra.mxu0 0
        %938 = vmatprep.subr.bf16.mxu0 0
        %939 = vmatpush1.bf16.msra.mxu0 0
        %940 = vmatprep.subr.bf16.mxu0 0
        %941 = vmatpush1.bf16.msra.mxu0 0
        %942 = vmatprep.subr.bf16.mxu0 0
        %943 = vmatpush1.bf16.msra.mxu0 0
        %944 = vmatprep.subr.bf16.mxu0 0
        %945 = vmatpush1.bf16.msra.mxu0 0
        %946 = vmatprep.subr.bf16.mxu0 0
        %947 = vmatpush1.bf16.msra.mxu0 0
        %948 = vmatprep.subr.bf16.mxu0 0
        %949 = vmatpush1.bf16.msra.mxu0 0
        %950 = vmatprep.mubr.bf16.mxu0 0
        %951 = vmatmul.mubr.bf16.gmra.mrb[0].mxu0 %v916
        %v952 = vpop.f32.mrb[0].mxu0
        %v953 = vadd.f32 0.0, %v952
        %v954 = vpop.f32.mrb[0].mxu0
        %v955 = vpop.f32.mrb[0].mxu0
        %v956 = vadd.f32 0.0, %v955
        %v957 = vpop.f32.mrb[0].mxu0
        %958 = vdwg.mxu0
        %v959 = vpack.c.bf16 %v956, %v953
        %s960 = scalar_lea.vmem %s4, 64
        %v961 = vld [vmem:[%s960] sm:$0xf]
        %v962 = vld [vmem:[%s960 + $0x4] sm:$0xf]
        %v963 = vld [vmem:[%s960 + $0x8] sm:$0xf]
        %v964 = vld [vmem:[%s960 + $0xc] sm:$0xf]
        %v965 = vld [vmem:[%s960 + $0x10] sm:$0xf]
        %v966 = vld [vmem:[%s960 + $0x14] sm:$0xf]
        %v967 = vld [vmem:[%s960 + $0x18] sm:$0xf]
        %v968 = vld [vmem:[%s960 + $0x1c] sm:$0xf]
        %v969 = vld [vmem:[%s960 + $0x20] sm:$0xf]
        %v970 = vld [vmem:[%s960 + $0x24] sm:$0xf]
        %v971 = vld [vmem:[%s960 + $0x28] sm:$0xf]
        %v972 = vld [vmem:[%s960 + $0x2c] sm:$0xf]
        %v973 = vld [vmem:[%s960 + $0x30] sm:$0xf]
        %v974 = vld [vmem:[%s960 + $0x34] sm:$0xf]
        %v975 = vld [vmem:[%s960 + $0x38] sm:$0xf]
        %v976 = vld [vmem:[%s960 + $0x3c] sm:$0xf]
        %v993 = vunpack.c.l.b16 %v961
        %v994 = vunpack.c.l.b16 %v962
        %v995 = vunpack.c.l.b16 %v963
        %v996 = vunpack.c.l.b16 %v964
        %v997 = vunpack.c.l.b16 %v965
        %v998 = vunpack.c.l.b16 %v966
        %v999 = vunpack.c.l.b16 %v967
        %v1000 = vunpack.c.l.b16 %v968
        %v1001 = vunpack.c.l.b16 %v969
        %v1002 = vunpack.c.l.b16 %v970
        %v1003 = vunpack.c.l.b16 %v971
        %v1004 = vunpack.c.l.b16 %v972
        %v1005 = vunpack.c.l.b16 %v973
        %v1006 = vunpack.c.l.b16 %v974
        %v1007 = vunpack.c.l.b16 %v975
        %v1008 = vunpack.c.l.b16 %v976
        %v1009 = vpack.c.b16 %v994, %v993
        %v1010 = vpack.c.b16 %v996, %v995
        %v1011 = vpack.c.b16 %v998, %v997
        %v1012 = vpack.c.b16 %v1000, %v999
        %v1013 = vpack.c.b16 %v1002, %v1001
        %v1014 = vpack.c.b16 %v1004, %v1003
        %v1015 = vpack.c.b16 %v1006, %v1005
        %v1016 = vpack.c.b16 %v1008, %v1007
        %1025 = vmatprep.subr.bf16.mxu0 0
        %1026 = vmatpush1.bf16.msra.mxu0 %v1009
        %1027 = vmatprep.subr.bf16.mxu0 0
        %1028 = vmatpush1.bf16.msra.mxu0 %v1010
        %1029 = vmatprep.subr.bf16.mxu0 0
        %1030 = vmatpush1.bf16.msra.mxu0 %v1011
        %1031 = vmatprep.subr.bf16.mxu0 0
        %1032 = vmatpush1.bf16.msra.mxu0 %v1012
        %1033 = vmatprep.subr.bf16.mxu0 0
        %1034 = vmatpush1.bf16.msra.mxu0 %v1013
        %1035 = vmatprep.subr.bf16.mxu0 0
        %1036 = vmatpush1.bf16.msra.mxu0 %v1014
        %1037 = vmatprep.subr.bf16.mxu0 0
        %1038 = vmatpush1.bf16.msra.mxu0 %v1015
        %1039 = vmatprep.subr.bf16.mxu0 0
        %1040 = vmatpush1.bf16.msra.mxu0 %v1016
        %1041 = vmatprep.subr.bf16.mxu0 0
        %1042 = vmatpush1.bf16.msra.mxu0 0
        %1043 = vmatprep.subr.bf16.mxu0 0
        %1044 = vmatpush1.bf16.msra.mxu0 0
        %1045 = vmatprep.subr.bf16.mxu0 0
        %1046 = vmatpush1.bf16.msra.mxu0 0
        %1047 = vmatprep.subr.bf16.mxu0 0
        %1048 = vmatpush1.bf16.msra.mxu0 0
        %1049 = vmatprep.subr.bf16.mxu0 0
        %1050 = vmatpush1.bf16.msra.mxu0 0
        %1051 = vmatprep.subr.bf16.mxu0 0
        %1052 = vmatpush1.bf16.msra.mxu0 0
        %1053 = vmatprep.subr.bf16.mxu0 0
        %1054 = vmatpush1.bf16.msra.mxu0 0
        %1055 = vmatprep.subr.bf16.mxu0 0
        %1056 = vmatpush1.bf16.msra.mxu0 0
        %1057 = vmatprep.mubr.bf16.mxu0 0
        %1058 = vmatmul.mubr.bf16.gmra.mrb[0].mxu0 %v959
        %v1059 = vpop.f32.mrb[0].mxu0
        %v1060 = vadd.f32 0.0, %v1059
        %v1061 = vpop.f32.mrb[0].mxu0
        %v1062 = vpop.f32.mrb[0].mxu0
        %v1063 = vadd.f32 0.0, %v1062
        %v1064 = vpop.f32.mrb[0].mxu0
        %1065 = vdwg.mxu0
        %v1082 = vunpack.c.l.b16 %v809
        %v1083 = vunpack.c.l.b16 %v810
        %v1084 = vunpack.c.l.b16 %v811
        %v1085 = vunpack.c.l.b16 %v812
        %v1086 = vunpack.c.l.b16 %v813
        %v1087 = vunpack.c.l.b16 %v814
        %v1088 = vunpack.c.l.b16 %v815
        %v1089 = vunpack.c.l.b16 %v816
        %v1090 = vunpack.c.l.b16 %v817
        %v1091 = vunpack.c.l.b16 %v818
        %v1092 = vunpack.c.l.b16 %v819
        %v1093 = vunpack.c.l.b16 %v820
        %v1094 = vunpack.c.l.b16 %v821
        %v1095 = vunpack.c.l.b16 %v822
        %v1096 = vunpack.c.l.b16 %v823
        %v1097 = vunpack.c.l.b16 %v824
        %v1098 = vpack.c.b16 %v1083, %v1082
        %v1099 = vpack.c.b16 %v1085, %v1084
        %v1100 = vpack.c.b16 %v1087, %v1086
        %v1101 = vpack.c.b16 %v1089, %v1088
        %v1102 = vpack.c.b16 %v1091, %v1090
        %v1103 = vpack.c.b16 %v1093, %v1092
        %v1104 = vpack.c.b16 %v1095, %v1094
        %v1105 = vpack.c.b16 %v1097, %v1096
        %1114 = vmatprep.subr.bf16.mxu0 0
        %1115 = vmatpush1.bf16.msra.mxu0 %v1098
        %1116 = vmatprep.subr.bf16.mxu0 0
        %1117 = vmatpush1.bf16.msra.mxu0 %v1099
        %1118 = vmatprep.subr.bf16.mxu0 0
        %1119 = vmatpush1.bf16.msra.mxu0 %v1100
        %1120 = vmatprep.subr.bf16.mxu0 0
        %1121 = vmatpush1.bf16.msra.mxu0 %v1101
        %1122 = vmatprep.subr.bf16.mxu0 0
        %1123 = vmatpush1.bf16.msra.mxu0 %v1102
        %1124 = vmatprep.subr.bf16.mxu0 0
        %1125 = vmatpush1.bf16.msra.mxu0 %v1103
        %1126 = vmatprep.subr.bf16.mxu0 0
        %1127 = vmatpush1.bf16.msra.mxu0 %v1104
        %1128 = vmatprep.subr.bf16.mxu0 0
        %1129 = vmatpush1.bf16.msra.mxu0 %v1105
        %1130 = vmatprep.subr.bf16.mxu0 0
        %1131 = vmatpush1.bf16.msra.mxu0 0
        %1132 = vmatprep.subr.bf16.mxu0 0
        %1133 = vmatpush1.bf16.msra.mxu0 0
        %1134 = vmatprep.subr.bf16.mxu0 0
        %1135 = vmatpush1.bf16.msra.mxu0 0
        %1136 = vmatprep.subr.bf16.mxu0 0
        %1137 = vmatpush1.bf16.msra.mxu0 0
        %1138 = vmatprep.subr.bf16.mxu0 0
        %1139 = vmatpush1.bf16.msra.mxu0 0
        %1140 = vmatprep.subr.bf16.mxu0 0
        %1141 = vmatpush1.bf16.msra.mxu0 0
        %1142 = vmatprep.subr.bf16.mxu0 0
        %1143 = vmatpush1.bf16.msra.mxu0 0
        %1144 = vmatprep.subr.bf16.mxu0 0
        %1145 = vmatpush1.bf16.msra.mxu0 0
        %1146 = vmatprep.mubr.bf16.mxu0 0
        %1147 = vmatmul.mubr.bf16.gmra.mrb[0].mxu0 %v808
        %v1148 = vpop.f32.mrb[0].mxu0
        %v1149 = vadd.f32 %v1060, %v1148
        %v1150 = vpop.f32.mrb[0].mxu0
        %v1151 = vpop.f32.mrb[0].mxu0
        %v1152 = vadd.f32 %v1063, %v1151
        %v1153 = vpop.f32.mrb[0].mxu0
        %1154 = vdwg.mxu0
        %v1155 = vpack.c.bf16 %v498, %v494
        %v1156 = vpack.c.bf16 %v584, %v580
        %v1157 = vpack.c.bf16 %v670, %v666
        %1158 = vmatprep.subr.bf16.mxu0 0
        %1159 = vmatpush1.bf16.xpose.msra.mxu0 %v1156
        %1160 = vmatprep.subr.bf16.mxu0 0
        %1161 = vmatpush1.bf16.xpose.msra.mxu0 0
        %1162 = vmatprep.subr.bf16.mxu0 0
        %1163 = vmatpush1.bf16.xpose.msra.mxu0 0
        %1164 = vmatprep.subr.bf16.mxu0 0
        %1165 = vmatpush1.bf16.xpose.msra.mxu0 0
        %1166 = vmatprep.subr.bf16.mxu0 0
        %1167 = vmatpush1.bf16.xpose.msra.mxu0 0
        %1168 = vmatprep.subr.bf16.mxu0 0
        %1169 = vmatpush1.bf16.xpose.msra.mxu0 0
        %1170 = vmatprep.subr.bf16.mxu0 0
        %1171 = vmatpush1.bf16.xpose.msra.mxu0 0
        %1172 = vmatprep.subr.bf16.mxu0 0
        %1173 = vmatpush1.bf16.xpose.msra.mxu0 0
        %1174 = vmatprep.subr.bf16.mxu0 0
        %1175 = vmatpush1.bf16.xpose.msra.mxu0 0
        %1176 = vmatprep.subr.bf16.mxu0 0
        %1177 = vmatpush1.bf16.xpose.msra.mxu0 0
        %1178 = vmatprep.subr.bf16.mxu0 0
        %1179 = vmatpush1.bf16.xpose.msra.mxu0 0
        %1180 = vmatprep.subr.bf16.mxu0 0
        %1181 = vmatpush1.bf16.xpose.msra.mxu0 0
        %1182 = vmatprep.subr.bf16.mxu0 0
        %1183 = vmatpush1.bf16.xpose.msra.mxu0 0
        %1184 = vmatprep.subr.bf16.mxu0 0
        %1185 = vmatpush1.bf16.xpose.msra.mxu0 0
        %1186 = vmatprep.subr.bf16.mxu0 0
        %1187 = vmatpush1.bf16.xpose.msra.mxu0 0
        %1188 = vmatprep.subr.bf16.mxu0 0
        %1189 = vmatpush1.bf16.xpose.msra.mxu0 0
        %1190 = vmatprep.mubr.bf16.mxu0 0
        %1191 = vmatmul.mubr.bf16.gmra.mrb[0].mxu0 %v1155
        %v1192 = vpop.f32.mrb[0].mxu0
        %v1193 = vadd.f32 0.0, %v1192
        %v1194 = vpop.f32.mrb[0].mxu0
        %v1195 = vpop.f32.mrb[0].mxu0
        %v1196 = vadd.f32 0.0, %v1195
        %v1197 = vpop.f32.mrb[0].mxu0
        %1198 = vdwg.mxu0
        %v1199 = vsel %vm718, %v1193, -inf
        %1200 = vmax.xlane.f32.xlu0 %v1199
        %v1201 = vpop.xlane.xlu0 %1200
        %v1202 = vsel %vm718, %v1196, -inf
        %1203 = vmax.xlane.f32.xlu0 %v1202
        %v1204 = vpop.xlane.xlu0 %1203
        %v1205 = vsub.f32 %v1193, %v1201
        %v1206 = vsub.f32 %v1196, %v1204
        %v1207 = vmul.f32 %v1205, 1.442695
        %v1208 = vpow.pop %v1207
        %v1209 = vmul.f32 %v1206, 1.442695
        %v1210 = vpow.pop %v1209
        %v1211 = vsel %vm718, %v1208, 0.0
        %1212 = vadd.xlane.f32.xlu0 %v1211
        %v1213 = vpop.xlane.xlu0 %1212
        %v1214 = vsel %vm718, %v1210, 0.0
        %1215 = vadd.xlane.f32.xlu0 %v1214
        %v1216 = vpop.xlane.xlu0 %1215
        %v1217 = vrcp.pop %v1213
        %v1218 = vrcp.pop %v1216
        %s1219 = sld [smem:[#allocation2 + $0x2]]
        %s1220 = sld [smem:[#allocation2 + $0x82]]
        %v1221 = vstv %s1219
        %v1222 = vmul.f32 %v1217, %v1221
        %v1223 = vmul.f32 %v1218, %v1221
        %v1224 = vmul.f32 %v1208, %v1222
        %v1225 = vmul.f32 %v1210, %v1223
        %s1226 = scalar_lea.vmem %s3, 32
        %v1227 = vld [vmem:[%s1226] sm:$0xff]
        %v1228 = vld [vmem:[%s1226 + $0x8] sm:$0xff]
        %v1229 = vadd.f32 %v1224, %v1227
        %v1230 = vadd.f32 %v1225, %v1228
        %v1231 = vmul.f32 %v1213, %v1217
        %v1232 = vmul.f32 %v1216, %v1218
        %v1233 = vmul.f32 %v1221, %v1231
        %v1234 = vmul.f32 %v1221, %v1232
        %v1235 = vstv %s1220
        %v1236 = vadd.f32 %v1233, %v1235
        %v1237 = vadd.f32 %v1234, %v1235
        %v1238 = vrcp.pop %v1236
        %v1239 = vmul.f32 1.0, %v1238
        %v1240 = vrcp.pop %v1237
        %v1241 = vmul.f32 1.0, %v1240
        %v1242 = vmul.f32 %v1229, %v1239
        %v1243 = vmul.f32 %v1230, %v1241
        %v1244 = vpack.c.bf16 %v1243, %v1242
        %v1246 = vsel %vm718, %v1244, 0
        %1248 = vmatprep.subr.bf16.mxu0 0
        %1249 = vmatpush1.bf16.msra.mxu0 %v1157
        %1250 = vmatprep.subr.bf16.mxu0 0
        %1251 = vmatpush1.bf16.msra.mxu0 0
        %1252 = vmatprep.subr.bf16.mxu0 0
        %1253 = vmatpush1.bf16.msra.mxu0 0
        %1254 = vmatprep.subr.bf16.mxu0 0
        %1255 = vmatpush1.bf16.msra.mxu0 0
        %1256 = vmatprep.subr.bf16.mxu0 0
        %1257 = vmatpush1.bf16.msra.mxu0 0
        %1258 = vmatprep.subr.bf16.mxu0 0
        %1259 = vmatpush1.bf16.msra.mxu0 0
        %1260 = vmatprep.subr.bf16.mxu0 0
        %1261 = vmatpush1.bf16.msra.mxu0 0
        %1262 = vmatprep.subr.bf16.mxu0 0
        %1263 = vmatpush1.bf16.msra.mxu0 0
        %1264 = vmatprep.subr.bf16.mxu0 0
        %1265 = vmatpush1.bf16.msra.mxu0 0
        %1266 = vmatprep.subr.bf16.mxu0 0
        %1267 = vmatpush1.bf16.msra.mxu0 0
        %1268 = vmatprep.subr.bf16.mxu0 0
        %1269 = vmatpush1.bf16.msra.mxu0 0
        %1270 = vmatprep.subr.bf16.mxu0 0
        %1271 = vmatpush1.bf16.msra.mxu0 0
        %1272 = vmatprep.subr.bf16.mxu0 0
        %1273 = vmatpush1.bf16.msra.mxu0 0
        %1274 = vmatprep.subr.bf16.mxu0 0
        %1275 = vmatpush1.bf16.msra.mxu0 0
        %1276 = vmatprep.subr.bf16.mxu0 0
        %1277 = vmatpush1.bf16.msra.mxu0 0
        %1278 = vmatprep.subr.bf16.mxu0 0
        %1279 = vmatpush1.bf16.msra.mxu0 0
        %1280 = vmatprep.mubr.bf16.mxu0 0
        %1281 = vmatmul.mubr.bf16.gmra.mrb[0].mxu0 %v1246
        %v1282 = vpop.f32.mrb[0].mxu0
        %v1283 = vadd.f32 0.0, %v1282
        %v1284 = vpop.f32.mrb[0].mxu0
        %v1285 = vpop.f32.mrb[0].mxu0
        %v1286 = vadd.f32 0.0, %v1285
        %v1287 = vpop.f32.mrb[0].mxu0
        %1288 = vdwg.mxu0
        %v1289 = vpack.c.bf16 %v1286, %v1283
        %s1290 = scalar_lea.vmem %s4, 128
        %v1291 = vld [vmem:[%s1290] sm:$0xf]
        %v1292 = vld [vmem:[%s1290 + $0x4] sm:$0xf]
        %v1293 = vld [vmem:[%s1290 + $0x8] sm:$0xf]
        %v1294 = vld [vmem:[%s1290 + $0xc] sm:$0xf]
        %v1295 = vld [vmem:[%s1290 + $0x10] sm:$0xf]
        %v1296 = vld [vmem:[%s1290 + $0x14] sm:$0xf]
        %v1297 = vld [vmem:[%s1290 + $0x18] sm:$0xf]
        %v1298 = vld [vmem:[%s1290 + $0x1c] sm:$0xf]
        %v1299 = vld [vmem:[%s1290 + $0x20] sm:$0xf]
        %v1300 = vld [vmem:[%s1290 + $0x24] sm:$0xf]
        %v1301 = vld [vmem:[%s1290 + $0x28] sm:$0xf]
        %v1302 = vld [vmem:[%s1290 + $0x2c] sm:$0xf]
        %v1303 = vld [vmem:[%s1290 + $0x30] sm:$0xf]
        %v1304 = vld [vmem:[%s1290 + $0x34] sm:$0xf]
        %v1305 = vld [vmem:[%s1290 + $0x38] sm:$0xf]
        %v1306 = vld [vmem:[%s1290 + $0x3c] sm:$0xf]
        %v1323 = vunpack.c.l.b16 %v1291
        %v1324 = vunpack.c.l.b16 %v1292
        %v1325 = vunpack.c.l.b16 %v1293
        %v1326 = vunpack.c.l.b16 %v1294
        %v1327 = vunpack.c.l.b16 %v1295
        %v1328 = vunpack.c.l.b16 %v1296
        %v1329 = vunpack.c.l.b16 %v1297
        %v1330 = vunpack.c.l.b16 %v1298
        %v1331 = vunpack.c.l.b16 %v1299
        %v1332 = vunpack.c.l.b16 %v1300
        %v1333 = vunpack.c.l.b16 %v1301
        %v1334 = vunpack.c.l.b16 %v1302
        %v1335 = vunpack.c.l.b16 %v1303
        %v1336 = vunpack.c.l.b16 %v1304
        %v1337 = vunpack.c.l.b16 %v1305
        %v1338 = vunpack.c.l.b16 %v1306
        %v1339 = vpack.c.b16 %v1324, %v1323
        %v1340 = vpack.c.b16 %v1326, %v1325
        %v1341 = vpack.c.b16 %v1328, %v1327
        %v1342 = vpack.c.b16 %v1330, %v1329
        %v1343 = vpack.c.b16 %v1332, %v1331
        %v1344 = vpack.c.b16 %v1334, %v1333
        %v1345 = vpack.c.b16 %v1336, %v1335
        %v1346 = vpack.c.b16 %v1338, %v1337
        %1355 = vmatprep.subr.bf16.mxu0 0
        %1356 = vmatpush1.bf16.msra.mxu0 %v1339
        %1357 = vmatprep.subr.bf16.mxu0 0
        %1358 = vmatpush1.bf16.msra.mxu0 %v1340
        %1359 = vmatprep.subr.bf16.mxu0 0
        %1360 = vmatpush1.bf16.msra.mxu0 %v1341
        %1361 = vmatprep.subr.bf16.mxu0 0
        %1362 = vmatpush1.bf16.msra.mxu0 %v1342
        %1363 = vmatprep.subr.bf16.mxu0 0
        %1364 = vmatpush1.bf16.msra.mxu0 %v1343
        %1365 = vmatprep.subr.bf16.mxu0 0
        %1366 = vmatpush1.bf16.msra.mxu0 %v1344
        %1367 = vmatprep.subr.bf16.mxu0 0
        %1368 = vmatpush1.bf16.msra.mxu0 %v1345
        %1369 = vmatprep.subr.bf16.mxu0 0
        %1370 = vmatpush1.bf16.msra.mxu0 %v1346
        %1371 = vmatprep.subr.bf16.mxu0 0
        %1372 = vmatpush1.bf16.msra.mxu0 0
        %1373 = vmatprep.subr.bf16.mxu0 0
        %1374 = vmatpush1.bf16.msra.mxu0 0
        %1375 = vmatprep.subr.bf16.mxu0 0
        %1376 = vmatpush1.bf16.msra.mxu0 0
        %1377 = vmatprep.subr.bf16.mxu0 0
        %1378 = vmatpush1.bf16.msra.mxu0 0
        %1379 = vmatprep.subr.bf16.mxu0 0
        %1380 = vmatpush1.bf16.msra.mxu0 0
        %1381 = vmatprep.subr.bf16.mxu0 0
        %1382 = vmatpush1.bf16.msra.mxu0 0
        %1383 = vmatprep.subr.bf16.mxu0 0
        %1384 = vmatpush1.bf16.msra.mxu0 0
        %1385 = vmatprep.subr.bf16.mxu0 0
        %1386 = vmatpush1.bf16.msra.mxu0 0
        %1387 = vmatprep.mubr.bf16.mxu0 0
        %1388 = vmatmul.mubr.bf16.gmra.mrb[0].mxu0 %v1289
        %v1389 = vpop.f32.mrb[0].mxu0
        %v1390 = vadd.f32 0.0, %v1389
        %v1391 = vpop.f32.mrb[0].mxu0
        %v1392 = vpop.f32.mrb[0].mxu0
        %v1393 = vadd.f32 0.0, %v1392
        %v1394 = vpop.f32.mrb[0].mxu0
        %1395 = vdwg.mxu0
        %v1396 = vadd.f32 %v1149, %v1390
        %v1397 = vadd.f32 %v1152, %v1393
        %v1398 = vpack.c.bf16 %v500, %v496
        %v1399 = vpack.c.bf16 %v586, %v582
        %v1400 = vpack.c.bf16 %v672, %v668
        %1401 = vmatprep.subr.bf16.mxu0 0
        %1402 = vmatpush1.bf16.xpose.msra.mxu0 %v1399
        %1403 = vmatprep.subr.bf16.mxu0 0
        %1404 = vmatpush1.bf16.xpose.msra.mxu0 0
        %1405 = vmatprep.subr.bf16.mxu0 0
        %1406 = vmatpush1.bf16.xpose.msra.mxu0 0
        %1407 = vmatprep.subr.bf16.mxu0 0
        %1408 = vmatpush1.bf16.xpose.msra.mxu0 0
        %1409 = vmatprep.subr.bf16.mxu0 0
        %1410 = vmatpush1.bf16.xpose.msra.mxu0 0
        %1411 = vmatprep.subr.bf16.mxu0 0
        %1412 = vmatpush1.bf16.xpose.msra.mxu0 0
        %1413 = vmatprep.subr.bf16.mxu0 0
        %1414 = vmatpush1.bf16.xpose.msra.mxu0 0
        %1415 = vmatprep.subr.bf16.mxu0 0
        %1416 = vmatpush1.bf16.xpose.msra.mxu0 0
        %1417 = vmatprep.subr.bf16.mxu0 0
        %1418 = vmatpush1.bf16.xpose.msra.mxu0 0
        %1419 = vmatprep.subr.bf16.mxu0 0
        %1420 = vmatpush1.bf16.xpose.msra.mxu0 0
        %1421 = vmatprep.subr.bf16.mxu0 0
        %1422 = vmatpush1.bf16.xpose.msra.mxu0 0
        %1423 = vmatprep.subr.bf16.mxu0 0
        %1424 = vmatpush1.bf16.xpose.msra.mxu0 0
        %1425 = vmatprep.subr.bf16.mxu0 0
        %1426 = vmatpush1.bf16.xpose.msra.mxu0 0
        %1427 = vmatprep.subr.bf16.mxu0 0
        %1428 = vmatpush1.bf16.xpose.msra.mxu0 0
        %1429 = vmatprep.subr.bf16.mxu0 0
        %1430 = vmatpush1.bf16.xpose.msra.mxu0 0
        %1431 = vmatprep.subr.bf16.mxu0 0
        %1432 = vmatpush1.bf16.xpose.msra.mxu0 0
        %1433 = vmatprep.mubr.bf16.mxu0 0
        %1434 = vmatmul.mubr.bf16.gmra.mrb[0].mxu0 %v1398
        %v1435 = vpop.f32.mrb[0].mxu0
        %v1436 = vadd.f32 0.0, %v1435
        %v1437 = vpop.f32.mrb[0].mxu0
        %v1438 = vpop.f32.mrb[0].mxu0
        %v1439 = vadd.f32 0.0, %v1438
        %v1440 = vpop.f32.mrb[0].mxu0
        %1441 = vdwg.mxu0
        %v1442 = vsel %vm718, %v1436, -inf
        %1443 = vmax.xlane.f32.xlu0 %v1442
        %v1444 = vpop.xlane.xlu0 %1443
        %v1445 = vsel %vm718, %v1439, -inf
        %1446 = vmax.xlane.f32.xlu0 %v1445
        %v1447 = vpop.xlane.xlu0 %1446
        %v1448 = vsub.f32 %v1436, %v1444
        %v1449 = vsub.f32 %v1439, %v1447
        %v1450 = vmul.f32 %v1448, 1.442695
        %v1451 = vpow.pop %v1450
        %v1452 = vmul.f32 %v1449, 1.442695
        %v1453 = vpow.pop %v1452
        %v1454 = vsel %vm718, %v1451, 0.0
        %1455 = vadd.xlane.f32.xlu0 %v1454
        %v1456 = vpop.xlane.xlu0 %1455
        %v1457 = vsel %vm718, %v1453, 0.0
        %1458 = vadd.xlane.f32.xlu0 %v1457
        %v1459 = vpop.xlane.xlu0 %1458
        %v1460 = vrcp.pop %v1456
        %v1461 = vrcp.pop %v1459
        %s1462 = sld [smem:[#allocation2 + $0x3]]
        %s1463 = sld [smem:[#allocation2 + $0x83]]
        %v1464 = vstv %s1462
        %v1465 = vmul.f32 %v1460, %v1464
        %v1466 = vmul.f32 %v1461, %v1464
        %v1467 = vmul.f32 %v1451, %v1465
        %v1468 = vmul.f32 %v1453, %v1466
        %s1469 = scalar_lea.vmem %s3, 48
        %v1470 = vld [vmem:[%s1469] sm:$0xff]
        %v1471 = vld [vmem:[%s1469 + $0x8] sm:$0xff]
        %v1472 = vadd.f32 %v1467, %v1470
        %v1473 = vadd.f32 %v1468, %v1471
        %v1474 = vmul.f32 %v1456, %v1460
        %v1475 = vmul.f32 %v1459, %v1461
        %v1476 = vmul.f32 %v1464, %v1474
        %v1477 = vmul.f32 %v1464, %v1475
        %v1478 = vstv %s1463
        %v1479 = vadd.f32 %v1476, %v1478
        %v1480 = vadd.f32 %v1477, %v1478
        %v1481 = vrcp.pop %v1479
        %v1482 = vmul.f32 1.0, %v1481
        %v1483 = vrcp.pop %v1480
        %v1484 = vmul.f32 1.0, %v1483
        %v1485 = vmul.f32 %v1472, %v1482
        %v1486 = vmul.f32 %v1473, %v1484
        %v1487 = vpack.c.bf16 %v1486, %v1485
        %v1489 = vsel %vm718, %v1487, 0
        %1491 = vmatprep.subr.bf16.mxu0 0
        %1492 = vmatpush1.bf16.msra.mxu0 %v1400
        %1493 = vmatprep.subr.bf16.mxu0 0
        %1494 = vmatpush1.bf16.msra.mxu0 0
        %1495 = vmatprep.subr.bf16.mxu0 0
        %1496 = vmatpush1.bf16.msra.mxu0 0
        %1497 = vmatprep.subr.bf16.mxu0 0
        %1498 = vmatpush1.bf16.msra.mxu0 0
        %1499 = vmatprep.subr.bf16.mxu0 0
        %1500 = vmatpush1.bf16.msra.mxu0 0
        %1501 = vmatprep.subr.bf16.mxu0 0
        %1502 = vmatpush1.bf16.msra.mxu0 0
        %1503 = vmatprep.subr.bf16.mxu0 0
        %1504 = vmatpush1.bf16.msra.mxu0 0
        %1505 = vmatprep.subr.bf16.mxu0 0
        %1506 = vmatpush1.bf16.msra.mxu0 0
        %1507 = vmatprep.subr.bf16.mxu0 0
        %1508 = vmatpush1.bf16.msra.mxu0 0
        %1509 = vmatprep.subr.bf16.mxu0 0
        %1510 = vmatpush1.bf16.msra.mxu0 0
        %1511 = vmatprep.subr.bf16.mxu0 0
        %1512 = vmatpush1.bf16.msra.mxu0 0
        %1513 = vmatprep.subr.bf16.mxu0 0
        %1514 = vmatpush1.bf16.msra.mxu0 0
        %1515 = vmatprep.subr.bf16.mxu0 0
        %1516 = vmatpush1.bf16.msra.mxu0 0
        %1517 = vmatprep.subr.bf16.mxu0 0
        %1518 = vmatpush1.bf16.msra.mxu0 0
        %1519 = vmatprep.subr.bf16.mxu0 0
        %1520 = vmatpush1.bf16.msra.mxu0 0
        %1521 = vmatprep.subr.bf16.mxu0 0
        %1522 = vmatpush1.bf16.msra.mxu0 0
        %1523 = vmatprep.mubr.bf16.mxu0 0
        %1524 = vmatmul.mubr.bf16.gmra.mrb[0].mxu0 %v1489
        %v1525 = vpop.f32.mrb[0].mxu0
        %v1526 = vadd.f32 0.0, %v1525
        %v1527 = vpop.f32.mrb[0].mxu0
        %v1528 = vpop.f32.mrb[0].mxu0
        %v1529 = vadd.f32 0.0, %v1528
        %v1530 = vpop.f32.mrb[0].mxu0
        %1531 = vdwg.mxu0
        %v1532 = vpack.c.bf16 %v1529, %v1526
        %s1533 = scalar_lea.vmem %s4, 192
        %v1534 = vld [vmem:[%s1533] sm:$0xf]
        %v1535 = vld [vmem:[%s1533 + $0x4] sm:$0xf]
        %v1536 = vld [vmem:[%s1533 + $0x8] sm:$0xf]
        %v1537 = vld [vmem:[%s1533 + $0xc] sm:$0xf]
        %v1538 = vld [vmem:[%s1533 + $0x10] sm:$0xf]
        %v1539 = vld [vmem:[%s1533 + $0x14] sm:$0xf]
        %v1540 = vld [vmem:[%s1533 + $0x18] sm:$0xf]
        %v1541 = vld [vmem:[%s1533 + $0x1c] sm:$0xf]
        %v1542 = vld [vmem:[%s1533 + $0x20] sm:$0xf]
        %v1543 = vld [vmem:[%s1533 + $0x24] sm:$0xf]
        %v1544 = vld [vmem:[%s1533 + $0x28] sm:$0xf]
        %v1545 = vld [vmem:[%s1533 + $0x2c] sm:$0xf]
        %v1546 = vld [vmem:[%s1533 + $0x30] sm:$0xf]
        %v1547 = vld [vmem:[%s1533 + $0x34] sm:$0xf]
        %v1548 = vld [vmem:[%s1533 + $0x38] sm:$0xf]
        %v1549 = vld [vmem:[%s1533 + $0x3c] sm:$0xf]
        %v1566 = vunpack.c.l.b16 %v1534
        %v1567 = vunpack.c.l.b16 %v1535
        %v1568 = vunpack.c.l.b16 %v1536
        %v1569 = vunpack.c.l.b16 %v1537
        %v1570 = vunpack.c.l.b16 %v1538
        %v1571 = vunpack.c.l.b16 %v1539
        %v1572 = vunpack.c.l.b16 %v1540
        %v1573 = vunpack.c.l.b16 %v1541
        %v1574 = vunpack.c.l.b16 %v1542
        %v1575 = vunpack.c.l.b16 %v1543
        %v1576 = vunpack.c.l.b16 %v1544
        %v1577 = vunpack.c.l.b16 %v1545
        %v1578 = vunpack.c.l.b16 %v1546
        %v1579 = vunpack.c.l.b16 %v1547
        %v1580 = vunpack.c.l.b16 %v1548
        %v1581 = vunpack.c.l.b16 %v1549
        %v1582 = vpack.c.b16 %v1567, %v1566
        %v1583 = vpack.c.b16 %v1569, %v1568
        %v1584 = vpack.c.b16 %v1571, %v1570
        %v1585 = vpack.c.b16 %v1573, %v1572
        %v1586 = vpack.c.b16 %v1575, %v1574
        %v1587 = vpack.c.b16 %v1577, %v1576
        %v1588 = vpack.c.b16 %v1579, %v1578
        %v1589 = vpack.c.b16 %v1581, %v1580
        %1598 = vmatprep.subr.bf16.mxu0 0
        %1599 = vmatpush1.bf16.msra.mxu0 %v1582
        %1600 = vmatprep.subr.bf16.mxu0 0
        %1601 = vmatpush1.bf16.msra.mxu0 %v1583
        %1602 = vmatprep.subr.bf16.mxu0 0
        %1603 = vmatpush1.bf16.msra.mxu0 %v1584
        %1604 = vmatprep.subr.bf16.mxu0 0
        %1605 = vmatpush1.bf16.msra.mxu0 %v1585
        %1606 = vmatprep.subr.bf16.mxu0 0
        %1607 = vmatpush1.bf16.msra.mxu0 %v1586
        %1608 = vmatprep.subr.bf16.mxu0 0
        %1609 = vmatpush1.bf16.msra.mxu0 %v1587
        %1610 = vmatprep.subr.bf16.mxu0 0
        %1611 = vmatpush1.bf16.msra.mxu0 %v1588
        %1612 = vmatprep.subr.bf16.mxu0 0
        %1613 = vmatpush1.bf16.msra.mxu0 %v1589
        %1614 = vmatprep.subr.bf16.mxu0 0
        %1615 = vmatpush1.bf16.msra.mxu0 0
        %1616 = vmatprep.subr.bf16.mxu0 0
        %1617 = vmatpush1.bf16.msra.mxu0 0
        %1618 = vmatprep.subr.bf16.mxu0 0
        %1619 = vmatpush1.bf16.msra.mxu0 0
        %1620 = vmatprep.subr.bf16.mxu0 0
        %1621 = vmatpush1.bf16.msra.mxu0 0
        %1622 = vmatprep.subr.bf16.mxu0 0
        %1623 = vmatpush1.bf16.msra.mxu0 0
        %1624 = vmatprep.subr.bf16.mxu0 0
        %1625 = vmatpush1.bf16.msra.mxu0 0
        %1626 = vmatprep.subr.bf16.mxu0 0
        %1627 = vmatpush1.bf16.msra.mxu0 0
        %1628 = vmatprep.subr.bf16.mxu0 0
        %1629 = vmatpush1.bf16.msra.mxu0 0
        %1630 = vmatprep.mubr.bf16.mxu0 0
        %1631 = vmatmul.mubr.bf16.gmra.mrb[0].mxu0 %v1532
        %v1632 = vpop.f32.mrb[0].mxu0
        %v1633 = vadd.f32 0.0, %v1632
        %v1634 = vpop.f32.mrb[0].mxu0
        %v1635 = vpop.f32.mrb[0].mxu0
        %v1636 = vadd.f32 0.0, %v1635
        %v1637 = vpop.f32.mrb[0].mxu0
        %1638 = vdwg.mxu0
        %v1639 = vadd.f32 %v1396, %v1633
        %v1640 = vadd.f32 %v1397, %v1636
        %v1641 = vld [vmem:[%s5] sm:$0x1]
        %v1643 = vlaneseq
        %v1644 = vshrl.u32 %v1643, 7
        %v1645 = vsub.s32 0, %v1644
        %v1646 = vrot.slane %v1641, %v1645
        %v1648 = vadd.f32 %v1639, %v1646
        %v1649 = vadd.f32 %v1640, %v1646
        %1650 = vst.msk [vmem:[%s258] sm:$0xff] %vm412, %v1648
        %1651 = vst.msk [vmem:[%s258 + $0x8] sm:$0xff] %vm412, %v1649
        %s1652 = sand.u32 %s160, 1
        %s1653 = scalar_lea.sflag [#allocation3], %s1652
        %s1654 = sand.u32 %s160, 1
        %s1655 = smul.addr %s1654, 16
        %s1656 = scalar_lea.vmem [#allocation5], %s1655
        // Predicated region
        $region49: #{tpu_custom_call.1} parent=43 // pred_check
          %p1657 = pneg %p170
        $region50: #{tpu_custom_call.1} parent=43 // pred_check_branch
          %1659 = sbr.rel (%p1657) target = $region52
        $region51: #{tpu_custom_call.1} parent=43 // pred_region
          %s1661 = ssub.s32 256, 256
          %1662 = vsyncadd %s1653, %s1661
          %s1663 = smul.addr %s21, 2
          %s1664 = smul.addr %s1663, 128
          %s1665 = scalar_lea.hbm %s6, %s1664
          %s1666 = sshll.u32 %s1656, 4
          %s1667 = int_to_ptr.vmem [resolvable:$true] %s1666
          %1672 = dma.vmem_to_hbm [thread:$0]  %s1667, 256, %s1665, %s1653, 128, 128, 8
        $region52: #{tpu_custom_call.1} parent=43 // pred_fallthru
          _
      $region44: #{tpu_custom_call.1} parent=5 // pred_fallthru
        _
      %p1673 = scmp.le.s32.totalorder 2, %s16
      // Predicated region
      $region53: #{tpu_custom_call.1} parent=5 // pred_check
        %p1674 = pneg %p1673
      $region54: #{tpu_custom_call.1} parent=5 // pred_check_branch
        %1676 = sbr.rel (%p1674) target = $region56
      $region55: #{tpu_custom_call.1} parent=5 // pred_region
        %s1677 = ssub.s32 %s16, 2
        // Predicated region
        $region57: #{tpu_custom_call.1} parent=55 // pred_check
          %p1678 = pneg %p176
        $region58: #{tpu_custom_call.1} parent=55 // pred_check_branch
          %1680 = sbr.rel (%p1678) target = $region60
        $region59: #{tpu_custom_call.1} parent=55 // pred_region
          %s1681 = sand.u32 %s161, 1
          %s1682 = scalar_lea.sflag [#allocation3], %s1681
          %s1683 = sand.u32 %s161, 1
          %s1684 = smul.addr %s1683, 16
          %s1685 = scalar_lea.vmem [#allocation5], %s1684
          %1686 = dma.done %s1682, 256
        $region60: #{tpu_custom_call.1} parent=55 // pred_fallthru
          _
      $region56: #{tpu_custom_call.1} parent=5 // pred_fallthru
        _
    $region6: #{tpu_custom_call.1} parent=1 // loop_footer
      %s20 = sadd.s32 1, %s16
    $region7: #{tpu_custom_call.1} parent=1 // loop_footer_branch
      %15 = sbr.rel target = $region3
    $region8: #{tpu_custom_call.1} parent=1 // loop_exit
      _
    %1687 = vsyncpa [#allocation3], 1
    %s1688 = scalar_lea.sflag [#allocation3], 1
    %1689 = vsyncpa %s1688, 1
    %1690 = vsyncpa [#allocation4], 1
    %s1691 = scalar_lea.sflag [#allocation4], 1
    %1692 = vsyncpa %s1691, 1

</llo_original>
